<compile_context>
chip_gen: v7x
topology: tpu7x:2x2x1
jax: 0.10.0
libtpu: 0.0.40
codegen_flags: <defaults>
</compile_context>

<pallas_src>
import jax
import jax.numpy as jnp
import numpy as np
from jax.experimental import pallas as pl
from jax.experimental.pallas import tpu as pltpu


def avgpool_kernel(x_ref, sel_ref, o_ref):
    # x_ref  : (Rt, K)  packed input rows (K = g*W, lane-dense)
    # sel_ref: (K, N)   block-diagonal 2x2-pool selector, nonzeros = 0.25
    # o_ref  : (Rt, N)  packed pooled rows (N = (g/2)*(W/2), lane-dense)
    o_ref[...] = jnp.dot(
        x_ref[...],
        sel_ref[...],
        preferred_element_type=jnp.float32,
        precision=jax.lax.Precision.HIGHEST,
    ).astype(o_ref.dtype)


def _round_up(x, m):
    return (x + m - 1) // m * m


def _pick_pack(R, W, Wh, itemsize, max_sel_bytes=4 << 20):
    """Smallest even divisor g of R giving a lane-dense packed layout:
    prefer N = (g/2)*Wh % 128 == 0 (unmasked stores), then K = g*W >= 512."""
    best = None
    for g in range(2, min(R, 4096) + 1, 2):
        if R % g:
            continue
        K, N = g * W, (g // 2) * Wh
        if K * N * itemsize > max_sel_bytes:
            continue
        score = (N % 128 == 0, K >= 512, -g)
        if best is None or score > best[0]:
            best = (score, g)
    # TODO(synk): for very large W even g=2 exceeds the selector budget; a
    # chunked (per-256-lane) block selector would keep MXU work O(128)/element.
    return best[1] if best is not None else 2


def _pick_row_block(Rp, row_in_bytes, target_bytes=4 << 20):
    """Packed rows per grid step: multiple of 8, ~target_bytes of input per
    block, and >= 2 roughly balanced grid steps whenever Rp allows (v7x)."""
    if Rp <= 8:
        return Rp
    rt = max(8, (target_bytes // max(row_in_bytes, 1)) // 8 * 8)
    rt = min(rt, (Rp // 8) * 8)                  # never exceed a full block
    rt = min(rt, _round_up((Rp + 1) // 2, 8))    # >= 2 steps for 2 TensorCores
    return max(rt, 8)


def avgpool(x):
    """2x2 stride-2 average pool on NCHW input (PyTorch `avgpool.forward`)."""
    B, C, H, W = x.shape
    assert H % 2 == 0 and W % 2 == 0, "spatial dims must be even"
    Hh, Wh = H // 2, W // 2
    itemsize = jnp.dtype(x.dtype).itemsize

    R = B * C * H                        # total image rows (even, since H is)
    g = _pick_pack(R, W, Wh, itemsize)   # image rows packed per flat row
    Rp, K, N = R // g, g * W, (g // 2) * Wh

    # Packed layout (free contiguous reshape).  g even => every 2x2 row pair
    # lives inside one packed row; packed output == flat (B*C*Hh, Wh) layout.
    x2 = x.reshape(Rp, K)

    # Block-diagonal selector folding height add + width pool + the /4 scale.
    m = np.repeat(np.arange(g // 2), Wh)          # block (row-pair) per column
    j = np.tile(np.arange(Wh), g // 2)            # output column within block
    cols = np.arange(N)
    sel_np = np.zeros((K, N), np.float32)
    for dk in (0, 1):
        for dw in (0, 1):
            sel_np[(2 * m + dk) * W + (2 * j + dw), cols] = 0.25
    sel = jnp.asarray(sel_np, dtype=x.dtype)      # 0.25 exact in bf16/f32

    # Row-block sizing with lane/sublane-padded VMEM accounting.
    row_in_bytes = _round_up(K, 128) * itemsize
    row_out_bytes = _round_up(N, 128) * itemsize
    Rt = _pick_row_block(Rp, row_in_bytes)
    grid = (pl.cdiv(Rp, Rt),)

    blk = _round_up(Rt, 8)
    in_blk = blk * row_in_bytes
    out_blk = blk * row_out_bytes
    sel_blk = _round_up(K, 8) * row_out_bytes
    vmem_limit = 2 * (in_blk + out_blk) + 2 * sel_blk       # double-buffered
    vmem_limit += 2 * (in_blk + sel_blk)                     # HIGHEST-prec scratch
    vmem_limit = int(min(max(vmem_limit + (4 << 20), 16 << 20), 48 << 20))

    cost = pl.CostEstimate(
        flops=2 * Rp * K * N,
        transcendentals=0,
        bytes_accessed=(Rp * K + Rp * N + K * N) * itemsize,
    )

    out2 = pl.pallas_call(
        avgpool_kernel,
        out_shape=jax.ShapeDtypeStruct((Rp, N), x.dtype),
        grid=grid,
        in_specs=[
            pl.BlockSpec((Rt, K), lambda i: (i, 0)),
            pl.BlockSpec((K, N), lambda i: (0, 0)),
        ],
        out_specs=pl.BlockSpec((Rt, N), lambda i: (i, 0)),
        compiler_params=pltpu.CompilerParams(
            dimension_semantics=("parallel",),
            vmem_limit_bytes=vmem_limit,
        ),
        cost_estimate=cost,
    )(x2, sel)

    return out2.reshape(B, C, Hh, Wh)


if __name__ == "__main__":
    key = jax.random.PRNGKey(0)
    x = jax.random.normal(key, (2, 4, 16, 16), dtype=jnp.float32)

    out = avgpool(x)
    out = jax.block_until_ready(out)

    # Reference: exact PyTorch-forward semantics reproduced in JAX.
    ref = (x[:, :, ::2, ::2] + x[:, :, 1::2, ::2]
           + x[:, :, ::2, 1::2] + x[:, :, 1::2, 1::2]) / 4.0

    assert out.shape == (2, 4, 8, 8), out.shape
    np.testing.assert_allclose(np.asarray(out), np.asarray(ref), rtol=1e-5, atol=1e-5)
    print("KERNEL_OK")
</pallas_src>

<mosaic_0001>
module attributes {stable_mosaic.version = 11 : i64} {
  func.func @avgpool_kernel(%arg0: i32, %arg1: memref<4x512xf32, #tpu.memory_space<vmem>>, %arg2: memref<512x128xf32, #tpu.memory_space<vmem>>, %arg3: memref<4x128xf32, #tpu.memory_space<vmem>>) attributes {dimension_semantics = [#tpu.dimension_semantics<parallel>], iteration_bounds = array<i64: 1>, scalar_prefetch = 0 : i64, scratch_operands = 0 : i64, tpu.core_type = #tpu.core_type<tc>, window_params = [{transform_indices = @transform_0, window_bounds = array<i64: 4, 512>}, {pipeline_mode = #tpu.pipeline_mode<synchronous>, transform_indices = @transform_1, window_bounds = array<i64: 512, 128>}, {transform_indices = @transform_2, window_bounds = array<i64: 4, 128>}]} {
    %c0 = arith.constant 0 : index
    %c0_0 = arith.constant 0 : index
    %0 = vector.load %arg1[%c0, %c0_0] : memref<4x512xf32, #tpu.memory_space<vmem>>, vector<4x512xf32>
    %c0_1 = arith.constant 0 : index
    %c0_2 = arith.constant 0 : index
    %1 = vector.load %arg2[%c0_1, %c0_2] : memref<512x128xf32, #tpu.memory_space<vmem>>, vector<512x128xf32>
    %cst = arith.constant dense<0.000000e+00> : vector<4x128xf32>
    %2 = tpu.matmul %0, %1, %cst {dimension_numbers = #tpu.dot_dimension_numbers<[1], [0], [0], [1], [0, 0, 1, 1], [], []>, precision = #tpu.contract_precision<fp32>} : vector<4x512xf32>, vector<512x128xf32>, vector<4x128xf32> -> vector<4x128xf32>
    %c0_3 = arith.constant 0 : index
    %c0_4 = arith.constant 0 : index
    %3 = vector.load %arg3[%c0_3, %c0_4] : memref<4x128xf32, #tpu.memory_space<vmem>>, vector<4x128xf32>
    tpu.vector_store %arg3[%c0_3, %c0_4], %2 {strides = array<i32>} : memref<4x128xf32, #tpu.memory_space<vmem>>, vector<4x128xf32>,
    return
  }
  func.func @transform_0(%arg0: i32) -> (i32, i32) {
    %c0_i32 = arith.constant 0 : i32
    %c0_i32_0 = arith.constant 0 : i32
    return %arg0, %c0_i32 : i32, i32
  }
  func.func @transform_1(%arg0: i32) -> (i32, i32) {
    %c0_i32 = arith.constant 0 : i32
    %c0_i32_0 = arith.constant 0 : i32
    %c0_i32_1 = arith.constant 0 : i32
    return %c0_i32, %c0_i32_0 : i32, i32
  }
  func.func @transform_2(%arg0: i32) -> (i32, i32) {
    %c0_i32 = arith.constant 0 : i32
    %c0_i32_0 = arith.constant 0 : i32
    return %arg0, %c0_i32 : i32, i32
  }
}

</mosaic_0001>

<llo_original>
// kernel: tpu_custom_call.1
$region0: #{tpu_custom_call.1}
  #allocation0 [shape = 'u32[]', space=smem, size = 0x4, offset = 0x4, fixed_abs, tag = 'smem constant byte address 0x4 - core index']
  #allocation1 [shape = 'u32[144,128]{1,0:T(1,128)}', space=vmem, size = 0x12000, scoped, tag = 'internal scratch']
  %s0 = inlined_call_operand.hbm [shape: f32[4,512], index: 0, kind: input, shape index: {}]
  %s1 = inlined_call_operand.hbm [shape: f32[512,128], index: 1, kind: input, shape index: {}]
  %s2 = inlined_call_operand.hbm [shape: f32[4,128], index: 2, kind: output, shape index: {}]
  %s3 = sld [smem:[#allocation0]]
  $region26: #{tpu_custom_call.1} parent=0
    _
  %s5 = ssub.s32 1, %s3
  %s6 = scalar_select 0, %s5, %s3
  $region1: #{tpu_custom_call.1} parent=0
    #allocation2 [shape = 'u8[8192]{0}', space=vmem, size = 0x2000, scoped, tag = 'input window, operand 0, single buffered']
    #allocation3 [shape = 's32[1]{0}', space=sflag, size = 0x4, scoped, tag = 'scoped memory for tpu_custom_call.1']
    #allocation4 [shape = 's32[1]{0}', space=sflag, size = 0x4, scoped, tag = 'scoped memory for tpu_custom_call.1']
    #allocation5 [shape = 'u8[262144]{0}', space=vmem, size = 0x40000, scoped, tag = 'input window, operand 1, single buffered']
    #allocation6 [shape = 's32[1]{0}', space=sflag, size = 0x4, scoped, tag = 'scoped memory for tpu_custom_call.1']
    #allocation7 [shape = 'u8[2048]{0}', space=vmem, size = 0x800, scoped, tag = 'output window, operand 0, single buffered']
    %7 = vsyncpa [#allocation3], 0
    %8 = vsyncpa [#allocation6], 0
    %9 = vsyncpa [#allocation4], 0
    // Predicated region
    $region2: #{tpu_custom_call.1} parent=1 // pred_check
      _
    $region3: #{tpu_custom_call.1} parent=1 // pred_check_branch
      %11 = sbr.rel (0) target = $region5
    $region4: #{tpu_custom_call.1} parent=1 // pred_region
      %s13 = ssub.s32 256, 256
      %14 = vsyncadd [#allocation3], %s13
      %s16 = sshll.u32 [#allocation2], 4
      %s17 = int_to_ptr.vmem [resolvable:$true] %s16
      %19 = dma.hbm_to_vmem [thread:$0]  %s0, 256, %s17, [#allocation3]
    $region5: #{tpu_custom_call.1} parent=1 // pred_fallthru
      _
    // Predicated region
    $region6: #{tpu_custom_call.1} parent=1 // pred_check
      _
    $region7: #{tpu_custom_call.1} parent=1 // pred_check_branch
      %21 = sbr.rel (0) target = $region9
    $region8: #{tpu_custom_call.1} parent=1 // pred_region
      %s23 = ssub.s32 8192, 8192
      %24 = vsyncadd [#allocation6], %s23
      %s25 = sshll.u32 [#allocation5], 4
      %s26 = int_to_ptr.vmem [resolvable:$true] %s25
      %31 = dma.hbm_to_vmem [thread:$0]  %s1, 8192, %s26, [#allocation6], 128, 128, 8
    $region9: #{tpu_custom_call.1} parent=1 // pred_fallthru
      _
    // Predicated region
    $region10: #{tpu_custom_call.1} parent=1 // pred_check
      _
    $region11: #{tpu_custom_call.1} parent=1 // pred_check_branch
      %33 = sbr.rel (0) target = $region13
    $region12: #{tpu_custom_call.1} parent=1 // pred_region
      %34 = dma.done [#allocation3], 256
    $region13: #{tpu_custom_call.1} parent=1 // pred_fallthru
      _
    // Predicated region
    $region14: #{tpu_custom_call.1} parent=1 // pred_check
      _
    $region15: #{tpu_custom_call.1} parent=1 // pred_check_branch
      %36 = sbr.rel (0) target = $region17
    $region16: #{tpu_custom_call.1} parent=1 // pred_region
      %37 = dma.done [#allocation6], 8192
    $region17: #{tpu_custom_call.1} parent=1 // pred_fallthru
      _
    %v38 = vld [vmem:[#allocation2] sm:$0xff]
    %v39 = vld [vmem:[#allocation2 + $0x8] sm:$0xff]
    %v40 = vld [vmem:[#allocation5] sm:$0xff]
    %v41 = vld [vmem:[#allocation5 + $0x8] sm:$0xff]
    %v42 = vld [vmem:[#allocation5 + $0x10] sm:$0xff]
    %v43 = vld [vmem:[#allocation5 + $0x18] sm:$0xff]
    %v44 = vld [vmem:[#allocation5 + $0x20] sm:$0xff]
    %v45 = vld [vmem:[#allocation5 + $0x28] sm:$0xff]
    %v46 = vld [vmem:[#allocation5 + $0x30] sm:$0xff]
    %v47 = vld [vmem:[#allocation5 + $0x38] sm:$0xff]
    %v48 = vld [vmem:[#allocation5 + $0x40] sm:$0xff]
    %v49 = vld [vmem:[#allocation5 + $0x48] sm:$0xff]
    %v50 = vld [vmem:[#allocation5 + $0x50] sm:$0xff]
    %v51 = vld [vmem:[#allocation5 + $0x58] sm:$0xff]
    %v52 = vld [vmem:[#allocation5 + $0x60] sm:$0xff]
    %v53 = vld [vmem:[#allocation5 + $0x68] sm:$0xff]
    %v54 = vld [vmem:[#allocation5 + $0x70] sm:$0xff]
    %v55 = vld [vmem:[#allocation5 + $0x78] sm:$0xff]
    %v56 = vld [vmem:[#allocation5 + $0x80] sm:$0xff]
    %v57 = vld [vmem:[#allocation5 + $0x88] sm:$0xff]
    %v58 = vld [vmem:[#allocation5 + $0x90] sm:$0xff]
    %v59 = vld [vmem:[#allocation5 + $0x98] sm:$0xff]
    %v60 = vld [vmem:[#allocation5 + $0xa0] sm:$0xff]
    %v61 = vld [vmem:[#allocation5 + $0xa8] sm:$0xff]
    %v62 = vld [vmem:[#allocation5 + $0xb0] sm:$0xff]
    %v63 = vld [vmem:[#allocation5 + $0xb8] sm:$0xff]
    %v64 = vld [vmem:[#allocation5 + $0xc0] sm:$0xff]
    %v65 = vld [vmem:[#allocation5 + $0xc8] sm:$0xff]
    %v66 = vld [vmem:[#allocation5 + $0xd0] sm:$0xff]
    %v67 = vld [vmem:[#allocation5 + $0xd8] sm:$0xff]
    %v68 = vld [vmem:[#allocation5 + $0xe0] sm:$0xff]
    %v69 = vld [vmem:[#allocation5 + $0xe8] sm:$0xff]
    %v70 = vld [vmem:[#allocation5 + $0xf0] sm:$0xff]
    %v71 = vld [vmem:[#allocation5 + $0xf8] sm:$0xff]
    %v72 = vld [vmem:[#allocation5 + $0x100] sm:$0xff]
    %v73 = vld [vmem:[#allocation5 + $0x108] sm:$0xff]
    %v74 = vld [vmem:[#allocation5 + $0x110] sm:$0xff]
    %v75 = vld [vmem:[#allocation5 + $0x118] sm:$0xff]
    %v76 = vld [vmem:[#allocation5 + $0x120] sm:$0xff]
    %v77 = vld [vmem:[#allocation5 + $0x128] sm:$0xff]
    %v78 = vld [vmem:[#allocation5 + $0x130] sm:$0xff]
    %v79 = vld [vmem:[#allocation5 + $0x138] sm:$0xff]
    %v80 = vld [vmem:[#allocation5 + $0x140] sm:$0xff]
    %v81 = vld [vmem:[#allocation5 + $0x148] sm:$0xff]
    %v82 = vld [vmem:[#allocation5 + $0x150] sm:$0xff]
    %v83 = vld [vmem:[#allocation5 + $0x158] sm:$0xff]
    %v84 = vld [vmem:[#allocation5 + $0x160] sm:$0xff]
    %v85 = vld [vmem:[#allocation5 + $0x168] sm:$0xff]
    %v86 = vld [vmem:[#allocation5 + $0x170] sm:$0xff]
    %v87 = vld [vmem:[#allocation5 + $0x178] sm:$0xff]
    %v88 = vld [vmem:[#allocation5 + $0x180] sm:$0xff]
    %v89 = vld [vmem:[#allocation5 + $0x188] sm:$0xff]
    %v90 = vld [vmem:[#allocation5 + $0x190] sm:$0xff]
    %v91 = vld [vmem:[#allocation5 + $0x198] sm:$0xff]
    %v92 = vld [vmem:[#allocation5 + $0x1a0] sm:$0xff]
    %v93 = vld [vmem:[#allocation5 + $0x1a8] sm:$0xff]
    %v94 = vld [vmem:[#allocation5 + $0x1b0] sm:$0xff]
    %v95 = vld [vmem:[#allocation5 + $0x1b8] sm:$0xff]
    %v96 = vld [vmem:[#allocation5 + $0x1c0] sm:$0xff]
    %v97 = vld [vmem:[#allocation5 + $0x1c8] sm:$0xff]
    %v98 = vld [vmem:[#allocation5 + $0x1d0] sm:$0xff]
    %v99 = vld [vmem:[#allocation5 + $0x1d8] sm:$0xff]
    %v100 = vld [vmem:[#allocation5 + $0x1e0] sm:$0xff]
    %v101 = vld [vmem:[#allocation5 + $0x1e8] sm:$0xff]
    %v102 = vld [vmem:[#allocation5 + $0x1f0] sm:$0xff]
    %v103 = vld [vmem:[#allocation5 + $0x1f8] sm:$0xff]
    %v106 = vcombine.high %v38, %v38
    %v107 = vcombine.high %v39, %v39
    %110 = vmatprep.subr.mxu0 0.0
    %v111 = vand.u32 %v40, 4294901760
    %112 = vmatpush1.msra.mxu0 %v111
    %113 = vmatprep.subr.mxu0 0.0
    %v114 = vand.u32 %v41, 4294901760
    %115 = vmatpush1.msra.mxu0 %v114
    %116 = vmatprep.subr.mxu0 0.0
    %v117 = vand.u32 %v42, 4294901760
    %118 = vmatpush1.msra.mxu0 %v117
    %119 = vmatprep.subr.mxu0 0.0
    %v120 = vand.u32 %v43, 4294901760
    %121 = vmatpush1.msra.mxu0 %v120
    %122 = vmatprep.subr.mxu0 0.0
    %v123 = vand.u32 %v44, 4294901760
    %124 = vmatpush1.msra.mxu0 %v123
    %125 = vmatprep.subr.mxu0 0.0
    %v126 = vand.u32 %v45, 4294901760
    %127 = vmatpush1.msra.mxu0 %v126
    %128 = vmatprep.subr.mxu0 0.0
    %v129 = vand.u32 %v46, 4294901760
    %130 = vmatpush1.msra.mxu0 %v129
    %131 = vmatprep.subr.mxu0 0.0
    %v132 = vand.u32 %v47, 4294901760
    %133 = vmatpush1.msra.mxu0 %v132
    %134 = vmatprep.subr.mxu0 0.0
    %v135 = vand.u32 %v48, 4294901760
    %136 = vmatpush1.msra.mxu0 %v135
    %137 = vmatprep.subr.mxu0 0.0
    %v138 = vand.u32 %v49, 4294901760
    %139 = vmatpush1.msra.mxu0 %v138
    %140 = vmatprep.subr.mxu0 0.0
    %v141 = vand.u32 %v50, 4294901760
    %142 = vmatpush1.msra.mxu0 %v141
    %143 = vmatprep.subr.mxu0 0.0
    %v144 = vand.u32 %v51, 4294901760
    %145 = vmatpush1.msra.mxu0 %v144
    %146 = vmatprep.subr.mxu0 0.0
    %v147 = vand.u32 %v52, 4294901760
    %148 = vmatpush1.msra.mxu0 %v147
    %149 = vmatprep.subr.mxu0 0.0
    %v150 = vand.u32 %v53, 4294901760
    %151 = vmatpush1.msra.mxu0 %v150
    %152 = vmatprep.subr.mxu0 0.0
    %v153 = vand.u32 %v54, 4294901760
    %154 = vmatpush1.msra.mxu0 %v153
    %155 = vmatprep.subr.mxu0 0.0
    %v156 = vand.u32 %v55, 4294901760
    %157 = vmatpush1.msra.mxu0 %v156
    %158 = vmatprep.subr.mxu0 0.0
    %v159 = vand.u32 %v56, 4294901760
    %160 = vmatpush1.msra.mxu0 %v159
    %161 = vmatprep.subr.mxu0 0.0
    %v162 = vand.u32 %v57, 4294901760
    %163 = vmatpush1.msra.mxu0 %v162
    %164 = vmatprep.subr.mxu0 0.0
    %v165 = vand.u32 %v58, 4294901760
    %166 = vmatpush1.msra.mxu0 %v165
    %167 = vmatprep.subr.mxu0 0.0
    %v168 = vand.u32 %v59, 4294901760
    %169 = vmatpush1.msra.mxu0 %v168
    %170 = vmatprep.subr.mxu0 0.0
    %v171 = vand.u32 %v60, 4294901760
    %172 = vmatpush1.msra.mxu0 %v171
    %173 = vmatprep.subr.mxu0 0.0
    %v174 = vand.u32 %v61, 4294901760
    %175 = vmatpush1.msra.mxu0 %v174
    %176 = vmatprep.subr.mxu0 0.0
    %v177 = vand.u32 %v62, 4294901760
    %178 = vmatpush1.msra.mxu0 %v177
    %179 = vmatprep.subr.mxu0 0.0
    %v180 = vand.u32 %v63, 4294901760
    %181 = vmatpush1.msra.mxu0 %v180
    %182 = vmatprep.subr.mxu0 0.0
    %v183 = vand.u32 %v64, 4294901760
    %184 = vmatpush1.msra.mxu0 %v183
    %185 = vmatprep.subr.mxu0 0.0
    %v186 = vand.u32 %v65, 4294901760
    %187 = vmatpush1.msra.mxu0 %v186
    %188 = vmatprep.subr.mxu0 0.0
    %v189 = vand.u32 %v66, 4294901760
    %190 = vmatpush1.msra.mxu0 %v189
    %191 = vmatprep.subr.mxu0 0.0
    %v192 = vand.u32 %v67, 4294901760
    %193 = vmatpush1.msra.mxu0 %v192
    %194 = vmatprep.subr.mxu0 0.0
    %v195 = vand.u32 %v68, 4294901760
    %196 = vmatpush1.msra.mxu0 %v195
    %197 = vmatprep.subr.mxu0 0.0
    %v198 = vand.u32 %v69, 4294901760
    %199 = vmatpush1.msra.mxu0 %v198
    %200 = vmatprep.subr.mxu0 0.0
    %v201 = vand.u32 %v70, 4294901760
    %202 = vmatpush1.msra.mxu0 %v201
    %203 = vmatprep.subr.mxu0 0.0
    %v204 = vand.u32 %v71, 4294901760
    %205 = vmatpush1.msra.mxu0 %v204
    %v206 = vand.u32 %v106, 4294901760
    %v207 = vsub.f32 %v106, %v206
    %v208 = vand.u32 %v207, 4294901760
    %v209 = vsub.f32 %v207, %v208
    %v210 = vand.u32 %v209, 4294901760
    %211 = vmatprep.mubr.f32.mxu0 %v210
    %v212 = vand.u32 %v38, 4294901760
    %v213 = vsub.f32 %v38, %v212
    %v214 = vand.u32 %v213, 4294901760
    %v215 = vsub.f32 %v213, %v214
    %v216 = vand.u32 %v215, 4294901760
    %217 = vmatmul.mubr.f32.gmra.mrb[0].mxu0 %v216
    %v218 = vpop.f32.mrb[0].mxu0
    %v219 = vadd.f32 0.0, %v218
    %v220 = vpop.f32.mrb[0].mxu0
    %221 = vdwg.mxu0
    %222 = vmatprep.subr.mxu0 0.0
    %v223 = vand.u32 %v40, 4294901760
    %v224 = vsub.f32 %v40, %v223
    %v225 = vand.u32 %v224, 4294901760
    %v226 = vsub.f32 %v224, %v225
    %v227 = vand.u32 %v226, 4294901760
    %228 = vmatpush1.msra.mxu0 %v227
    %229 = vmatprep.subr.mxu0 0.0
    %v230 = vand.u32 %v41, 4294901760
    %v231 = vsub.f32 %v41, %v230
    %v232 = vand.u32 %v231, 4294901760
    %v233 = vsub.f32 %v231, %v232
    %v234 = vand.u32 %v233, 4294901760
    %235 = vmatpush1.msra.mxu0 %v234
    %236 = vmatprep.subr.mxu0 0.0
    %v237 = vand.u32 %v42, 4294901760
    %v238 = vsub.f32 %v42, %v237
    %v239 = vand.u32 %v238, 4294901760
    %v240 = vsub.f32 %v238, %v239
    %v241 = vand.u32 %v240, 4294901760
    %242 = vmatpush1.msra.mxu0 %v241
    %243 = vmatprep.subr.mxu0 0.0
    %v244 = vand.u32 %v43, 4294901760
    %v245 = vsub.f32 %v43, %v244
    %v246 = vand.u32 %v245, 4294901760
    %v247 = vsub.f32 %v245, %v246
    %v248 = vand.u32 %v247, 4294901760
    %249 = vmatpush1.msra.mxu0 %v248
    %250 = vmatprep.subr.mxu0 0.0
    %v251 = vand.u32 %v44, 4294901760
    %v252 = vsub.f32 %v44, %v251
    %v253 = vand.u32 %v252, 4294901760
    %v254 = vsub.f32 %v252, %v253
    %v255 = vand.u32 %v254, 4294901760
    %256 = vmatpush1.msra.mxu0 %v255
    %257 = vmatprep.subr.mxu0 0.0
    %v258 = vand.u32 %v45, 4294901760
    %v259 = vsub.f32 %v45, %v258
    %v260 = vand.u32 %v259, 4294901760
    %v261 = vsub.f32 %v259, %v260
    %v262 = vand.u32 %v261, 4294901760
    %263 = vmatpush1.msra.mxu0 %v262
    %264 = vmatprep.subr.mxu0 0.0
    %v265 = vand.u32 %v46, 4294901760
    %v266 = vsub.f32 %v46, %v265
    %v267 = vand.u32 %v266, 4294901760
    %v268 = vsub.f32 %v266, %v267
    %v269 = vand.u32 %v268, 4294901760
    %270 = vmatpush1.msra.mxu0 %v269
    %271 = vmatprep.subr.mxu0 0.0
    %v272 = vand.u32 %v47, 4294901760
    %v273 = vsub.f32 %v47, %v272
    %v274 = vand.u32 %v273, 4294901760
    %v275 = vsub.f32 %v273, %v274
    %v276 = vand.u32 %v275, 4294901760
    %277 = vmatpush1.msra.mxu0 %v276
    %278 = vmatprep.subr.mxu0 0.0
    %v279 = vand.u32 %v48, 4294901760
    %v280 = vsub.f32 %v48, %v279
    %v281 = vand.u32 %v280, 4294901760
    %v282 = vsub.f32 %v280, %v281
    %v283 = vand.u32 %v282, 4294901760
    %284 = vmatpush1.msra.mxu0 %v283
    %285 = vmatprep.subr.mxu0 0.0
    %v286 = vand.u32 %v49, 4294901760
    %v287 = vsub.f32 %v49, %v286
    %v288 = vand.u32 %v287, 4294901760
    %v289 = vsub.f32 %v287, %v288
    %v290 = vand.u32 %v289, 4294901760
    %291 = vmatpush1.msra.mxu0 %v290
    %292 = vmatprep.subr.mxu0 0.0
    %v293 = vand.u32 %v50, 4294901760
    %v294 = vsub.f32 %v50, %v293
    %v295 = vand.u32 %v294, 4294901760
    %v296 = vsub.f32 %v294, %v295
    %v297 = vand.u32 %v296, 4294901760
    %298 = vmatpush1.msra.mxu0 %v297
    %299 = vmatprep.subr.mxu0 0.0
    %v300 = vand.u32 %v51, 4294901760
    %v301 = vsub.f32 %v51, %v300
    %v302 = vand.u32 %v301, 4294901760
    %v303 = vsub.f32 %v301, %v302
    %v304 = vand.u32 %v303, 4294901760
    %305 = vmatpush1.msra.mxu0 %v304
    %306 = vmatprep.subr.mxu0 0.0
    %v307 = vand.u32 %v52, 4294901760
    %v308 = vsub.f32 %v52, %v307
    %v309 = vand.u32 %v308, 4294901760
    %v310 = vsub.f32 %v308, %v309
    %v311 = vand.u32 %v310, 4294901760
    %312 = vmatpush1.msra.mxu0 %v311
    %313 = vmatprep.subr.mxu0 0.0
    %v314 = vand.u32 %v53, 4294901760
    %v315 = vsub.f32 %v53, %v314
    %v316 = vand.u32 %v315, 4294901760
    %v317 = vsub.f32 %v315, %v316
    %v318 = vand.u32 %v317, 4294901760
    %319 = vmatpush1.msra.mxu0 %v318
    %320 = vmatprep.subr.mxu0 0.0
    %v321 = vand.u32 %v54, 4294901760
    %v322 = vsub.f32 %v54, %v321
    %v323 = vand.u32 %v322, 4294901760
    %v324 = vsub.f32 %v322, %v323
    %v325 = vand.u32 %v324, 4294901760
    %326 = vmatpush1.msra.mxu0 %v325
    %327 = vmatprep.subr.mxu0 0.0
    %v328 = vand.u32 %v55, 4294901760
    %v329 = vsub.f32 %v55, %v328
    %v330 = vand.u32 %v329, 4294901760
    %v331 = vsub.f32 %v329, %v330
    %v332 = vand.u32 %v331, 4294901760
    %333 = vmatpush1.msra.mxu0 %v332
    %334 = vmatprep.subr.mxu0 0.0
    %v335 = vand.u32 %v56, 4294901760
    %v336 = vsub.f32 %v56, %v335
    %v337 = vand.u32 %v336, 4294901760
    %v338 = vsub.f32 %v336, %v337
    %v339 = vand.u32 %v338, 4294901760
    %340 = vmatpush1.msra.mxu0 %v339
    %341 = vmatprep.subr.mxu0 0.0
    %v342 = vand.u32 %v57, 4294901760
    %v343 = vsub.f32 %v57, %v342
    %v344 = vand.u32 %v343, 4294901760
    %v345 = vsub.f32 %v343, %v344
    %v346 = vand.u32 %v345, 4294901760
    %347 = vmatpush1.msra.mxu0 %v346
    %348 = vmatprep.subr.mxu0 0.0
    %v349 = vand.u32 %v58, 4294901760
    %v350 = vsub.f32 %v58, %v349
    %v351 = vand.u32 %v350, 4294901760
    %v352 = vsub.f32 %v350, %v351
    %v353 = vand.u32 %v352, 4294901760
    %354 = vmatpush1.msra.mxu0 %v353
    %355 = vmatprep.subr.mxu0 0.0
    %v356 = vand.u32 %v59, 4294901760
    %v357 = vsub.f32 %v59, %v356
    %v358 = vand.u32 %v357, 4294901760
    %v359 = vsub.f32 %v357, %v358
    %v360 = vand.u32 %v359, 4294901760
    %361 = vmatpush1.msra.mxu0 %v360
    %362 = vmatprep.subr.mxu0 0.0
    %v363 = vand.u32 %v60, 4294901760
    %v364 = vsub.f32 %v60, %v363
    %v365 = vand.u32 %v364, 4294901760
    %v366 = vsub.f32 %v364, %v365
    %v367 = vand.u32 %v366, 4294901760
    %368 = vmatpush1.msra.mxu0 %v367
    %369 = vmatprep.subr.mxu0 0.0
    %v370 = vand.u32 %v61, 4294901760
    %v371 = vsub.f32 %v61, %v370
    %v372 = vand.u32 %v371, 4294901760
    %v373 = vsub.f32 %v371, %v372
    %v374 = vand.u32 %v373, 4294901760
    %375 = vmatpush1.msra.mxu0 %v374
    %376 = vmatprep.subr.mxu0 0.0
    %v377 = vand.u32 %v62, 4294901760
    %v378 = vsub.f32 %v62, %v377
    %v379 = vand.u32 %v378, 4294901760
    %v380 = vsub.f32 %v378, %v379
    %v381 = vand.u32 %v380, 4294901760
    %382 = vmatpush1.msra.mxu0 %v381
    %383 = vmatprep.subr.mxu0 0.0
    %v384 = vand.u32 %v63, 4294901760
    %v385 = vsub.f32 %v63, %v384
    %v386 = vand.u32 %v385, 4294901760
    %v387 = vsub.f32 %v385, %v386
    %v388 = vand.u32 %v387, 4294901760
    %389 = vmatpush1.msra.mxu0 %v388
    %390 = vmatprep.subr.mxu0 0.0
    %v391 = vand.u32 %v64, 4294901760
    %v392 = vsub.f32 %v64, %v391
    %v393 = vand.u32 %v392, 4294901760
    %v394 = vsub.f32 %v392, %v393
    %v395 = vand.u32 %v394, 4294901760
    %396 = vmatpush1.msra.mxu0 %v395
    %397 = vmatprep.subr.mxu0 0.0
    %v398 = vand.u32 %v65, 4294901760
    %v399 = vsub.f32 %v65, %v398
    %v400 = vand.u32 %v399, 4294901760
    %v401 = vsub.f32 %v399, %v400
    %v402 = vand.u32 %v401, 4294901760
    %403 = vmatpush1.msra.mxu0 %v402
    %404 = vmatprep.subr.mxu0 0.0
    %v405 = vand.u32 %v66, 4294901760
    %v406 = vsub.f32 %v66, %v405
    %v407 = vand.u32 %v406, 4294901760
    %v408 = vsub.f32 %v406, %v407
    %v409 = vand.u32 %v408, 4294901760
    %410 = vmatpush1.msra.mxu0 %v409
    %411 = vmatprep.subr.mxu0 0.0
    %v412 = vand.u32 %v67, 4294901760
    %v413 = vsub.f32 %v67, %v412
    %v414 = vand.u32 %v413, 4294901760
    %v415 = vsub.f32 %v413, %v414
    %v416 = vand.u32 %v415, 4294901760
    %417 = vmatpush1.msra.mxu0 %v416
    %418 = vmatprep.subr.mxu0 0.0
    %v419 = vand.u32 %v68, 4294901760
    %v420 = vsub.f32 %v68, %v419
    %v421 = vand.u32 %v420, 4294901760
    %v422 = vsub.f32 %v420, %v421
    %v423 = vand.u32 %v422, 4294901760
    %424 = vmatpush1.msra.mxu0 %v423
    %425 = vmatprep.subr.mxu0 0.0
    %v426 = vand.u32 %v69, 4294901760
    %v427 = vsub.f32 %v69, %v426
    %v428 = vand.u32 %v427, 4294901760
    %v429 = vsub.f32 %v427, %v428
    %v430 = vand.u32 %v429, 4294901760
    %431 = vmatpush1.msra.mxu0 %v430
    %432 = vmatprep.subr.mxu0 0.0
    %v433 = vand.u32 %v70, 4294901760
    %v434 = vsub.f32 %v70, %v433
    %v435 = vand.u32 %v434, 4294901760
    %v436 = vsub.f32 %v434, %v435
    %v437 = vand.u32 %v436, 4294901760
    %438 = vmatpush1.msra.mxu0 %v437
    %439 = vmatprep.subr.mxu0 0.0
    %v440 = vand.u32 %v71, 4294901760
    %v441 = vsub.f32 %v71, %v440
    %v442 = vand.u32 %v441, 4294901760
    %v443 = vsub.f32 %v441, %v442
    %v444 = vand.u32 %v443, 4294901760
    %445 = vmatpush1.msra.mxu0 %v444
    %v446 = vand.u32 %v106, 4294901760
    %447 = vmatprep.mubr.f32.mxu0 %v446
    %v448 = vand.u32 %v38, 4294901760
    %449 = vmatmul.mubr.f32.gmra.mrb[0].mxu0 %v448
    %v450 = vpop.f32.mrb[0].mxu0
    %v451 = vadd.f32 %v219, %v450
    %v452 = vpop.f32.mrb[0].mxu0
    %453 = vdwg.mxu0
    %454 = vmatprep.subr.mxu0 0.0
    %v455 = vand.u32 %v40, 4294901760
    %v456 = vsub.f32 %v40, %v455
    %457 = vmatpush1.msra.mxu0 %v456
    %458 = vmatprep.subr.mxu0 0.0
    %v459 = vand.u32 %v41, 4294901760
    %v460 = vsub.f32 %v41, %v459
    %461 = vmatpush1.msra.mxu0 %v460
    %462 = vmatprep.subr.mxu0 0.0
    %v463 = vand.u32 %v42, 4294901760
    %v464 = vsub.f32 %v42, %v463
    %465 = vmatpush1.msra.mxu0 %v464
    %466 = vmatprep.subr.mxu0 0.0
    %v467 = vand.u32 %v43, 4294901760
    %v468 = vsub.f32 %v43, %v467
    %469 = vmatpush1.msra.mxu0 %v468
    %470 = vmatprep.subr.mxu0 0.0
    %v471 = vand.u32 %v44, 4294901760
    %v472 = vsub.f32 %v44, %v471
    %473 = vmatpush1.msra.mxu0 %v472
    %474 = vmatprep.subr.mxu0 0.0
    %v475 = vand.u32 %v45, 4294901760
    %v476 = vsub.f32 %v45, %v475
    %477 = vmatpush1.msra.mxu0 %v476
    %478 = vmatprep.subr.mxu0 0.0
    %v479 = vand.u32 %v46, 4294901760
    %v480 = vsub.f32 %v46, %v479
    %481 = vmatpush1.msra.mxu0 %v480
    %482 = vmatprep.subr.mxu0 0.0
    %v483 = vand.u32 %v47, 4294901760
    %v484 = vsub.f32 %v47, %v483
    %485 = vmatpush1.msra.mxu0 %v484
    %486 = vmatprep.subr.mxu0 0.0
    %v487 = vand.u32 %v48, 4294901760
    %v488 = vsub.f32 %v48, %v487
    %489 = vmatpush1.msra.mxu0 %v488
    %490 = vmatprep.subr.mxu0 0.0
    %v491 = vand.u32 %v49, 4294901760
    %v492 = vsub.f32 %v49, %v491
    %493 = vmatpush1.msra.mxu0 %v492
    %494 = vmatprep.subr.mxu0 0.0
    %v495 = vand.u32 %v50, 4294901760
    %v496 = vsub.f32 %v50, %v495
    %497 = vmatpush1.msra.mxu0 %v496
    %498 = vmatprep.subr.mxu0 0.0
    %v499 = vand.u32 %v51, 4294901760
    %v500 = vsub.f32 %v51, %v499
    %501 = vmatpush1.msra.mxu0 %v500
    %502 = vmatprep.subr.mxu0 0.0
    %v503 = vand.u32 %v52, 4294901760
    %v504 = vsub.f32 %v52, %v503
    %505 = vmatpush1.msra.mxu0 %v504
    %506 = vmatprep.subr.mxu0 0.0
    %v507 = vand.u32 %v53, 4294901760
    %v508 = vsub.f32 %v53, %v507
    %509 = vmatpush1.msra.mxu0 %v508
    %510 = vmatprep.subr.mxu0 0.0
    %v511 = vand.u32 %v54, 4294901760
    %v512 = vsub.f32 %v54, %v511
    %513 = vmatpush1.msra.mxu0 %v512
    %514 = vmatprep.subr.mxu0 0.0
    %v515 = vand.u32 %v55, 4294901760
    %v516 = vsub.f32 %v55, %v515
    %517 = vmatpush1.msra.mxu0 %v516
    %518 = vmatprep.subr.mxu0 0.0
    %v519 = vand.u32 %v56, 4294901760
    %v520 = vsub.f32 %v56, %v519
    %521 = vmatpush1.msra.mxu0 %v520
    %522 = vmatprep.subr.mxu0 0.0
    %v523 = vand.u32 %v57, 4294901760
    %v524 = vsub.f32 %v57, %v523
    %525 = vmatpush1.msra.mxu0 %v524
    %526 = vmatprep.subr.mxu0 0.0
    %v527 = vand.u32 %v58, 4294901760
    %v528 = vsub.f32 %v58, %v527
    %529 = vmatpush1.msra.mxu0 %v528
    %530 = vmatprep.subr.mxu0 0.0
    %v531 = vand.u32 %v59, 4294901760
    %v532 = vsub.f32 %v59, %v531
    %533 = vmatpush1.msra.mxu0 %v532
    %534 = vmatprep.subr.mxu0 0.0
    %v535 = vand.u32 %v60, 4294901760
    %v536 = vsub.f32 %v60, %v535
    %537 = vmatpush1.msra.mxu0 %v536
    %538 = vmatprep.subr.mxu0 0.0
    %v539 = vand.u32 %v61, 4294901760
    %v540 = vsub.f32 %v61, %v539
    %541 = vmatpush1.msra.mxu0 %v540
    %542 = vmatprep.subr.mxu0 0.0
    %v543 = vand.u32 %v62, 4294901760
    %v544 = vsub.f32 %v62, %v543
    %545 = vmatpush1.msra.mxu0 %v544
    %546 = vmatprep.subr.mxu0 0.0
    %v547 = vand.u32 %v63, 4294901760
    %v548 = vsub.f32 %v63, %v547
    %549 = vmatpush1.msra.mxu0 %v548
    %550 = vmatprep.subr.mxu0 0.0
    %v551 = vand.u32 %v64, 4294901760
    %v552 = vsub.f32 %v64, %v551
    %553 = vmatpush1.msra.mxu0 %v552
    %554 = vmatprep.subr.mxu0 0.0
    %v555 = vand.u32 %v65, 4294901760
    %v556 = vsub.f32 %v65, %v555
    %557 = vmatpush1.msra.mxu0 %v556
    %558 = vmatprep.subr.mxu0 0.0
    %v559 = vand.u32 %v66, 4294901760
    %v560 = vsub.f32 %v66, %v559
    %561 = vmatpush1.msra.mxu0 %v560
    %562 = vmatprep.subr.mxu0 0.0
    %v563 = vand.u32 %v67, 4294901760
    %v564 = vsub.f32 %v67, %v563
    %565 = vmatpush1.msra.mxu0 %v564
    %566 = vmatprep.subr.mxu0 0.0
    %v567 = vand.u32 %v68, 4294901760
    %v568 = vsub.f32 %v68, %v567
    %569 = vmatpush1.msra.mxu0 %v568
    %570 = vmatprep.subr.mxu0 0.0
    %v571 = vand.u32 %v69, 4294901760
    %v572 = vsub.f32 %v69, %v571
    %573 = vmatpush1.msra.mxu0 %v572
    %574 = vmatprep.subr.mxu0 0.0
    %v575 = vand.u32 %v70, 4294901760
    %v576 = vsub.f32 %v70, %v575
    %577 = vmatpush1.msra.mxu0 %v576
    %578 = vmatprep.subr.mxu0 0.0
    %v579 = vand.u32 %v71, 4294901760
    %v580 = vsub.f32 %v71, %v579
    %581 = vmatpush1.msra.mxu0 %v580
    %v582 = vand.u32 %v106, 4294901760
    %v583 = vsub.f32 %v106, %v582
    %584 = vmatprep.mubr.f32.mxu0 %v583
    %v585 = vand.u32 %v38, 4294901760
    %v586 = vsub.f32 %v38, %v585
    %587 = vmatmul.mubr.f32.gmra.mrb[0].mxu0 %v586
    %v588 = vpop.f32.mrb[0].mxu0
    %v589 = vadd.f32 %v451, %v588
    %v590 = vpop.f32.mrb[0].mxu0
    %591 = vdwg.mxu0
    %592 = vmatprep.subr.mxu0 0.0
    %v593 = vand.u32 %v40, 4294901760
    %594 = vmatpush1.msra.mxu0 %v593
    %595 = vmatprep.subr.mxu0 0.0
    %v596 = vand.u32 %v41, 4294901760
    %597 = vmatpush1.msra.mxu0 %v596
    %598 = vmatprep.subr.mxu0 0.0
    %v599 = vand.u32 %v42, 4294901760
    %600 = vmatpush1.msra.mxu0 %v599
    %601 = vmatprep.subr.mxu0 0.0
    %v602 = vand.u32 %v43, 4294901760
    %603 = vmatpush1.msra.mxu0 %v602
    %604 = vmatprep.subr.mxu0 0.0
    %v605 = vand.u32 %v44, 4294901760
    %606 = vmatpush1.msra.mxu0 %v605
    %607 = vmatprep.subr.mxu0 0.0
    %v608 = vand.u32 %v45, 4294901760
    %609 = vmatpush1.msra.mxu0 %v608
    %610 = vmatprep.subr.mxu0 0.0
    %v611 = vand.u32 %v46, 4294901760
    %612 = vmatpush1.msra.mxu0 %v611
    %613 = vmatprep.subr.mxu0 0.0
    %v614 = vand.u32 %v47, 4294901760
    %615 = vmatpush1.msra.mxu0 %v614
    %616 = vmatprep.subr.mxu0 0.0
    %v617 = vand.u32 %v48, 4294901760
    %618 = vmatpush1.msra.mxu0 %v617
    %619 = vmatprep.subr.mxu0 0.0
    %v620 = vand.u32 %v49, 4294901760
    %621 = vmatpush1.msra.mxu0 %v620
    %622 = vmatprep.subr.mxu0 0.0
    %v623 = vand.u32 %v50, 4294901760
    %624 = vmatpush1.msra.mxu0 %v623
    %625 = vmatprep.subr.mxu0 0.0
    %v626 = vand.u32 %v51, 4294901760
    %627 = vmatpush1.msra.mxu0 %v626
    %628 = vmatprep.subr.mxu0 0.0
    %v629 = vand.u32 %v52, 4294901760
    %630 = vmatpush1.msra.mxu0 %v629
    %631 = vmatprep.subr.mxu0 0.0
    %v632 = vand.u32 %v53, 4294901760
    %633 = vmatpush1.msra.mxu0 %v632
    %634 = vmatprep.subr.mxu0 0.0
    %v635 = vand.u32 %v54, 4294901760
    %636 = vmatpush1.msra.mxu0 %v635
    %637 = vmatprep.subr.mxu0 0.0
    %v638 = vand.u32 %v55, 4294901760
    %639 = vmatpush1.msra.mxu0 %v638
    %640 = vmatprep.subr.mxu0 0.0
    %v641 = vand.u32 %v56, 4294901760
    %642 = vmatpush1.msra.mxu0 %v641
    %643 = vmatprep.subr.mxu0 0.0
    %v644 = vand.u32 %v57, 4294901760
    %645 = vmatpush1.msra.mxu0 %v644
    %646 = vmatprep.subr.mxu0 0.0
    %v647 = vand.u32 %v58, 4294901760
    %648 = vmatpush1.msra.mxu0 %v647
    %649 = vmatprep.subr.mxu0 0.0
    %v650 = vand.u32 %v59, 4294901760
    %651 = vmatpush1.msra.mxu0 %v650
    %652 = vmatprep.subr.mxu0 0.0
    %v653 = vand.u32 %v60, 4294901760
    %654 = vmatpush1.msra.mxu0 %v653
    %655 = vmatprep.subr.mxu0 0.0
    %v656 = vand.u32 %v61, 4294901760
    %657 = vmatpush1.msra.mxu0 %v656
    %658 = vmatprep.subr.mxu0 0.0
    %v659 = vand.u32 %v62, 4294901760
    %660 = vmatpush1.msra.mxu0 %v659
    %661 = vmatprep.subr.mxu0 0.0
    %v662 = vand.u32 %v63, 4294901760
    %663 = vmatpush1.msra.mxu0 %v662
    %664 = vmatprep.subr.mxu0 0.0
    %v665 = vand.u32 %v64, 4294901760
    %666 = vmatpush1.msra.mxu0 %v665
    %667 = vmatprep.subr.mxu0 0.0
    %v668 = vand.u32 %v65, 4294901760
    %669 = vmatpush1.msra.mxu0 %v668
    %670 = vmatprep.subr.mxu0 0.0
    %v671 = vand.u32 %v66, 4294901760
    %672 = vmatpush1.msra.mxu0 %v671
    %673 = vmatprep.subr.mxu0 0.0
    %v674 = vand.u32 %v67, 4294901760
    %675 = vmatpush1.msra.mxu0 %v674
    %676 = vmatprep.subr.mxu0 0.0
    %v677 = vand.u32 %v68, 4294901760
    %678 = vmatpush1.msra.mxu0 %v677
    %679 = vmatprep.subr.mxu0 0.0
    %v680 = vand.u32 %v69, 4294901760
    %681 = vmatpush1.msra.mxu0 %v680
    %682 = vmatprep.subr.mxu0 0.0
    %v683 = vand.u32 %v70, 4294901760
    %684 = vmatpush1.msra.mxu0 %v683
    %685 = vmatprep.subr.mxu0 0.0
    %v686 = vand.u32 %v71, 4294901760
    %687 = vmatpush1.msra.mxu0 %v686
    %v688 = vand.u32 %v106, 4294901760
    %v689 = vsub.f32 %v106, %v688
    %v690 = vand.u32 %v689, 4294901760
    %691 = vmatprep.mubr.f32.mxu0 %v690
    %v692 = vand.u32 %v38, 4294901760
    %v693 = vsub.f32 %v38, %v692
    %v694 = vand.u32 %v693, 4294901760
    %695 = vmatmul.mubr.f32.gmra.mrb[0].mxu0 %v694
    %v696 = vpop.f32.mrb[0].mxu0
    %v697 = vadd.f32 %v589, %v696
    %v698 = vpop.f32.mrb[0].mxu0
    %699 = vdwg.mxu0
    %700 = vmatprep.subr.mxu0 0.0
    %v701 = vand.u32 %v40, 4294901760
    %v702 = vsub.f32 %v40, %v701
    %v703 = vand.u32 %v702, 4294901760
    %704 = vmatpush1.msra.mxu0 %v703
    %705 = vmatprep.subr.mxu0 0.0
    %v706 = vand.u32 %v41, 4294901760
    %v707 = vsub.f32 %v41, %v706
    %v708 = vand.u32 %v707, 4294901760
    %709 = vmatpush1.msra.mxu0 %v708
    %710 = vmatprep.subr.mxu0 0.0
    %v711 = vand.u32 %v42, 4294901760
    %v712 = vsub.f32 %v42, %v711
    %v713 = vand.u32 %v712, 4294901760
    %714 = vmatpush1.msra.mxu0 %v713
    %715 = vmatprep.subr.mxu0 0.0
    %v716 = vand.u32 %v43, 4294901760
    %v717 = vsub.f32 %v43, %v716
    %v718 = vand.u32 %v717, 4294901760
    %719 = vmatpush1.msra.mxu0 %v718
    %720 = vmatprep.subr.mxu0 0.0
    %v721 = vand.u32 %v44, 4294901760
    %v722 = vsub.f32 %v44, %v721
    %v723 = vand.u32 %v722, 4294901760
    %724 = vmatpush1.msra.mxu0 %v723
    %725 = vmatprep.subr.mxu0 0.0
    %v726 = vand.u32 %v45, 4294901760
    %v727 = vsub.f32 %v45, %v726
    %v728 = vand.u32 %v727, 4294901760
    %729 = vmatpush1.msra.mxu0 %v728
    %730 = vmatprep.subr.mxu0 0.0
    %v731 = vand.u32 %v46, 4294901760
    %v732 = vsub.f32 %v46, %v731
    %v733 = vand.u32 %v732, 4294901760
    %734 = vmatpush1.msra.mxu0 %v733
    %735 = vmatprep.subr.mxu0 0.0
    %v736 = vand.u32 %v47, 4294901760
    %v737 = vsub.f32 %v47, %v736
    %v738 = vand.u32 %v737, 4294901760
    %739 = vmatpush1.msra.mxu0 %v738
    %740 = vmatprep.subr.mxu0 0.0
    %v741 = vand.u32 %v48, 4294901760
    %v742 = vsub.f32 %v48, %v741
    %v743 = vand.u32 %v742, 4294901760
    %744 = vmatpush1.msra.mxu0 %v743
    %745 = vmatprep.subr.mxu0 0.0
    %v746 = vand.u32 %v49, 4294901760
    %v747 = vsub.f32 %v49, %v746
    %v748 = vand.u32 %v747, 4294901760
    %749 = vmatpush1.msra.mxu0 %v748
    %750 = vmatprep.subr.mxu0 0.0
    %v751 = vand.u32 %v50, 4294901760
    %v752 = vsub.f32 %v50, %v751
    %v753 = vand.u32 %v752, 4294901760
    %754 = vmatpush1.msra.mxu0 %v753
    %755 = vmatprep.subr.mxu0 0.0
    %v756 = vand.u32 %v51, 4294901760
    %v757 = vsub.f32 %v51, %v756
    %v758 = vand.u32 %v757, 4294901760
    %759 = vmatpush1.msra.mxu0 %v758
    %760 = vmatprep.subr.mxu0 0.0
    %v761 = vand.u32 %v52, 4294901760
    %v762 = vsub.f32 %v52, %v761
    %v763 = vand.u32 %v762, 4294901760
    %764 = vmatpush1.msra.mxu0 %v763
    %765 = vmatprep.subr.mxu0 0.0
    %v766 = vand.u32 %v53, 4294901760
    %v767 = vsub.f32 %v53, %v766
    %v768 = vand.u32 %v767, 4294901760
    %769 = vmatpush1.msra.mxu0 %v768
    %770 = vmatprep.subr.mxu0 0.0
    %v771 = vand.u32 %v54, 4294901760
    %v772 = vsub.f32 %v54, %v771
    %v773 = vand.u32 %v772, 4294901760
    %774 = vmatpush1.msra.mxu0 %v773
    %775 = vmatprep.subr.mxu0 0.0
    %v776 = vand.u32 %v55, 4294901760
    %v777 = vsub.f32 %v55, %v776
    %v778 = vand.u32 %v777, 4294901760
    %779 = vmatpush1.msra.mxu0 %v778
    %780 = vmatprep.subr.mxu0 0.0
    %v781 = vand.u32 %v56, 4294901760
    %v782 = vsub.f32 %v56, %v781
    %v783 = vand.u32 %v782, 4294901760
    %784 = vmatpush1.msra.mxu0 %v783
    %785 = vmatprep.subr.mxu0 0.0
    %v786 = vand.u32 %v57, 4294901760
    %v787 = vsub.f32 %v57, %v786
    %v788 = vand.u32 %v787, 4294901760
    %789 = vmatpush1.msra.mxu0 %v788
    %790 = vmatprep.subr.mxu0 0.0
    %v791 = vand.u32 %v58, 4294901760
    %v792 = vsub.f32 %v58, %v791
    %v793 = vand.u32 %v792, 4294901760
    %794 = vmatpush1.msra.mxu0 %v793
    %795 = vmatprep.subr.mxu0 0.0
    %v796 = vand.u32 %v59, 4294901760
    %v797 = vsub.f32 %v59, %v796
    %v798 = vand.u32 %v797, 4294901760
    %799 = vmatpush1.msra.mxu0 %v798
    %800 = vmatprep.subr.mxu0 0.0
    %v801 = vand.u32 %v60, 4294901760
    %v802 = vsub.f32 %v60, %v801
    %v803 = vand.u32 %v802, 4294901760
    %804 = vmatpush1.msra.mxu0 %v803
    %805 = vmatprep.subr.mxu0 0.0
    %v806 = vand.u32 %v61, 4294901760
    %v807 = vsub.f32 %v61, %v806
    %v808 = vand.u32 %v807, 4294901760
    %809 = vmatpush1.msra.mxu0 %v808
    %810 = vmatprep.subr.mxu0 0.0
    %v811 = vand.u32 %v62, 4294901760
    %v812 = vsub.f32 %v62, %v811
    %v813 = vand.u32 %v812, 4294901760
    %814 = vmatpush1.msra.mxu0 %v813
    %815 = vmatprep.subr.mxu0 0.0
    %v816 = vand.u32 %v63, 4294901760
    %v817 = vsub.f32 %v63, %v816
    %v818 = vand.u32 %v817, 4294901760
    %819 = vmatpush1.msra.mxu0 %v818
    %820 = vmatprep.subr.mxu0 0.0
    %v821 = vand.u32 %v64, 4294901760
    %v822 = vsub.f32 %v64, %v821
    %v823 = vand.u32 %v822, 4294901760
    %824 = vmatpush1.msra.mxu0 %v823
    %825 = vmatprep.subr.mxu0 0.0
    %v826 = vand.u32 %v65, 4294901760
    %v827 = vsub.f32 %v65, %v826
    %v828 = vand.u32 %v827, 4294901760
    %829 = vmatpush1.msra.mxu0 %v828
    %830 = vmatprep.subr.mxu0 0.0
    %v831 = vand.u32 %v66, 4294901760
    %v832 = vsub.f32 %v66, %v831
    %v833 = vand.u32 %v832, 4294901760
    %834 = vmatpush1.msra.mxu0 %v833
    %835 = vmatprep.subr.mxu0 0.0
    %v836 = vand.u32 %v67, 4294901760
    %v837 = vsub.f32 %v67, %v836
    %v838 = vand.u32 %v837, 4294901760
    %839 = vmatpush1.msra.mxu0 %v838
    %840 = vmatprep.subr.mxu0 0.0
    %v841 = vand.u32 %v68, 4294901760
    %v842 = vsub.f32 %v68, %v841
    %v843 = vand.u32 %v842, 4294901760
    %844 = vmatpush1.msra.mxu0 %v843
    %845 = vmatprep.subr.mxu0 0.0
    %v846 = vand.u32 %v69, 4294901760
    %v847 = vsub.f32 %v69, %v846
    %v848 = vand.u32 %v847, 4294901760
    %849 = vmatpush1.msra.mxu0 %v848
    %850 = vmatprep.subr.mxu0 0.0
    %v851 = vand.u32 %v70, 4294901760
    %v852 = vsub.f32 %v70, %v851
    %v853 = vand.u32 %v852, 4294901760
    %854 = vmatpush1.msra.mxu0 %v853
    %855 = vmatprep.subr.mxu0 0.0
    %v856 = vand.u32 %v71, 4294901760
    %v857 = vsub.f32 %v71, %v856
    %v858 = vand.u32 %v857, 4294901760
    %859 = vmatpush1.msra.mxu0 %v858
    %v860 = vand.u32 %v106, 4294901760
    %861 = vmatprep.mubr.f32.mxu0 %v860
    %v862 = vand.u32 %v38, 4294901760
    %863 = vmatmul.mubr.f32.gmra.mrb[0].mxu0 %v862
    %v864 = vpop.f32.mrb[0].mxu0
    %v865 = vadd.f32 %v697, %v864
    %v866 = vpop.f32.mrb[0].mxu0
    %867 = vdwg.mxu0
    %868 = vmatprep.subr.mxu0 0.0
    %v869 = vand.u32 %v40, 4294901760
    %870 = vmatpush1.msra.mxu0 %v869
    %871 = vmatprep.subr.mxu0 0.0
    %v872 = vand.u32 %v41, 4294901760
    %873 = vmatpush1.msra.mxu0 %v872
    %874 = vmatprep.subr.mxu0 0.0
    %v875 = vand.u32 %v42, 4294901760
    %876 = vmatpush1.msra.mxu0 %v875
    %877 = vmatprep.subr.mxu0 0.0
    %v878 = vand.u32 %v43, 4294901760
    %879 = vmatpush1.msra.mxu0 %v878
    %880 = vmatprep.subr.mxu0 0.0
    %v881 = vand.u32 %v44, 4294901760
    %882 = vmatpush1.msra.mxu0 %v881
    %883 = vmatprep.subr.mxu0 0.0
    %v884 = vand.u32 %v45, 4294901760
    %885 = vmatpush1.msra.mxu0 %v884
    %886 = vmatprep.subr.mxu0 0.0
    %v887 = vand.u32 %v46, 4294901760
    %888 = vmatpush1.msra.mxu0 %v887
    %889 = vmatprep.subr.mxu0 0.0
    %v890 = vand.u32 %v47, 4294901760
    %891 = vmatpush1.msra.mxu0 %v890
    %892 = vmatprep.subr.mxu0 0.0
    %v893 = vand.u32 %v48, 4294901760
    %894 = vmatpush1.msra.mxu0 %v893
    %895 = vmatprep.subr.mxu0 0.0
    %v896 = vand.u32 %v49, 4294901760
    %897 = vmatpush1.msra.mxu0 %v896
    %898 = vmatprep.subr.mxu0 0.0
    %v899 = vand.u32 %v50, 4294901760
    %900 = vmatpush1.msra.mxu0 %v899
    %901 = vmatprep.subr.mxu0 0.0
    %v902 = vand.u32 %v51, 4294901760
    %903 = vmatpush1.msra.mxu0 %v902
    %904 = vmatprep.subr.mxu0 0.0
    %v905 = vand.u32 %v52, 4294901760
    %906 = vmatpush1.msra.mxu0 %v905
    %907 = vmatprep.subr.mxu0 0.0
    %v908 = vand.u32 %v53, 4294901760
    %909 = vmatpush1.msra.mxu0 %v908
    %910 = vmatprep.subr.mxu0 0.0
    %v911 = vand.u32 %v54, 4294901760
    %912 = vmatpush1.msra.mxu0 %v911
    %913 = vmatprep.subr.mxu0 0.0
    %v914 = vand.u32 %v55, 4294901760
    %915 = vmatpush1.msra.mxu0 %v914
    %916 = vmatprep.subr.mxu0 0.0
    %v917 = vand.u32 %v56, 4294901760
    %918 = vmatpush1.msra.mxu0 %v917
    %919 = vmatprep.subr.mxu0 0.0
    %v920 = vand.u32 %v57, 4294901760
    %921 = vmatpush1.msra.mxu0 %v920
    %922 = vmatprep.subr.mxu0 0.0
    %v923 = vand.u32 %v58, 4294901760
    %924 = vmatpush1.msra.mxu0 %v923
    %925 = vmatprep.subr.mxu0 0.0
    %v926 = vand.u32 %v59, 4294901760
    %927 = vmatpush1.msra.mxu0 %v926
    %928 = vmatprep.subr.mxu0 0.0
    %v929 = vand.u32 %v60, 4294901760
    %930 = vmatpush1.msra.mxu0 %v929
    %931 = vmatprep.subr.mxu0 0.0
    %v932 = vand.u32 %v61, 4294901760
    %933 = vmatpush1.msra.mxu0 %v932
    %934 = vmatprep.subr.mxu0 0.0
    %v935 = vand.u32 %v62, 4294901760
    %936 = vmatpush1.msra.mxu0 %v935
    %937 = vmatprep.subr.mxu0 0.0
    %v938 = vand.u32 %v63, 4294901760
    %939 = vmatpush1.msra.mxu0 %v938
    %940 = vmatprep.subr.mxu0 0.0
    %v941 = vand.u32 %v64, 4294901760
    %942 = vmatpush1.msra.mxu0 %v941
    %943 = vmatprep.subr.mxu0 0.0
    %v944 = vand.u32 %v65, 4294901760
    %945 = vmatpush1.msra.mxu0 %v944
    %946 = vmatprep.subr.mxu0 0.0
    %v947 = vand.u32 %v66, 4294901760
    %948 = vmatpush1.msra.mxu0 %v947
    %949 = vmatprep.subr.mxu0 0.0
    %v950 = vand.u32 %v67, 4294901760
    %951 = vmatpush1.msra.mxu0 %v950
    %952 = vmatprep.subr.mxu0 0.0
    %v953 = vand.u32 %v68, 4294901760
    %954 = vmatpush1.msra.mxu0 %v953
    %955 = vmatprep.subr.mxu0 0.0
    %v956 = vand.u32 %v69, 4294901760
    %957 = vmatpush1.msra.mxu0 %v956
    %958 = vmatprep.subr.mxu0 0.0
    %v959 = vand.u32 %v70, 4294901760
    %960 = vmatpush1.msra.mxu0 %v959
    %961 = vmatprep.subr.mxu0 0.0
    %v962 = vand.u32 %v71, 4294901760
    %963 = vmatpush1.msra.mxu0 %v962
    %v964 = vand.u32 %v106, 4294901760
    %965 = vmatprep.mubr.f32.mxu0 %v964
    %v966 = vand.u32 %v38, 4294901760
    %967 = vmatmul.mubr.f32.gmra.mrb[0].mxu0 %v966
    %v968 = vpop.f32.mrb[0].mxu0
    %v969 = vadd.f32 %v865, %v968
    %v970 = vpop.f32.mrb[0].mxu0
    %971 = vdwg.mxu0
    %972 = vmatprep.subr.mxu0 0.0
    %v973 = vand.u32 %v72, 4294901760
    %974 = vmatpush1.msra.mxu0 %v973
    %975 = vmatprep.subr.mxu0 0.0
    %v976 = vand.u32 %v73, 4294901760
    %977 = vmatpush1.msra.mxu0 %v976
    %978 = vmatprep.subr.mxu0 0.0
    %v979 = vand.u32 %v74, 4294901760
    %980 = vmatpush1.msra.mxu0 %v979
    %981 = vmatprep.subr.mxu0 0.0
    %v982 = vand.u32 %v75, 4294901760
    %983 = vmatpush1.msra.mxu0 %v982
    %984 = vmatprep.subr.mxu0 0.0
    %v985 = vand.u32 %v76, 4294901760
    %986 = vmatpush1.msra.mxu0 %v985
    %987 = vmatprep.subr.mxu0 0.0
    %v988 = vand.u32 %v77, 4294901760
    %989 = vmatpush1.msra.mxu0 %v988
    %990 = vmatprep.subr.mxu0 0.0
    %v991 = vand.u32 %v78, 4294901760
    %992 = vmatpush1.msra.mxu0 %v991
    %993 = vmatprep.subr.mxu0 0.0
    %v994 = vand.u32 %v79, 4294901760
    %995 = vmatpush1.msra.mxu0 %v994
    %996 = vmatprep.subr.mxu0 0.0
    %v997 = vand.u32 %v80, 4294901760
    %998 = vmatpush1.msra.mxu0 %v997
    %999 = vmatprep.subr.mxu0 0.0
    %v1000 = vand.u32 %v81, 4294901760
    %1001 = vmatpush1.msra.mxu0 %v1000
    %1002 = vmatprep.subr.mxu0 0.0
    %v1003 = vand.u32 %v82, 4294901760
    %1004 = vmatpush1.msra.mxu0 %v1003
    %1005 = vmatprep.subr.mxu0 0.0
    %v1006 = vand.u32 %v83, 4294901760
    %1007 = vmatpush1.msra.mxu0 %v1006
    %1008 = vmatprep.subr.mxu0 0.0
    %v1009 = vand.u32 %v84, 4294901760
    %1010 = vmatpush1.msra.mxu0 %v1009
    %1011 = vmatprep.subr.mxu0 0.0
    %v1012 = vand.u32 %v85, 4294901760
    %1013 = vmatpush1.msra.mxu0 %v1012
    %1014 = vmatprep.subr.mxu0 0.0
    %v1015 = vand.u32 %v86, 4294901760
    %1016 = vmatpush1.msra.mxu0 %v1015
    %1017 = vmatprep.subr.mxu0 0.0
    %v1018 = vand.u32 %v87, 4294901760
    %1019 = vmatpush1.msra.mxu0 %v1018
    %1020 = vmatprep.subr.mxu0 0.0
    %v1021 = vand.u32 %v88, 4294901760
    %1022 = vmatpush1.msra.mxu0 %v1021
    %1023 = vmatprep.subr.mxu0 0.0
    %v1024 = vand.u32 %v89, 4294901760
    %1025 = vmatpush1.msra.mxu0 %v1024
    %1026 = vmatprep.subr.mxu0 0.0
    %v1027 = vand.u32 %v90, 4294901760
    %1028 = vmatpush1.msra.mxu0 %v1027
    %1029 = vmatprep.subr.mxu0 0.0
    %v1030 = vand.u32 %v91, 4294901760
    %1031 = vmatpush1.msra.mxu0 %v1030
    %1032 = vmatprep.subr.mxu0 0.0
    %v1033 = vand.u32 %v92, 4294901760
    %1034 = vmatpush1.msra.mxu0 %v1033
    %1035 = vmatprep.subr.mxu0 0.0
    %v1036 = vand.u32 %v93, 4294901760
    %1037 = vmatpush1.msra.mxu0 %v1036
    %1038 = vmatprep.subr.mxu0 0.0
    %v1039 = vand.u32 %v94, 4294901760
    %1040 = vmatpush1.msra.mxu0 %v1039
    %1041 = vmatprep.subr.mxu0 0.0
    %v1042 = vand.u32 %v95, 4294901760
    %1043 = vmatpush1.msra.mxu0 %v1042
    %1044 = vmatprep.subr.mxu0 0.0
    %v1045 = vand.u32 %v96, 4294901760
    %1046 = vmatpush1.msra.mxu0 %v1045
    %1047 = vmatprep.subr.mxu0 0.0
    %v1048 = vand.u32 %v97, 4294901760
    %1049 = vmatpush1.msra.mxu0 %v1048
    %1050 = vmatprep.subr.mxu0 0.0
    %v1051 = vand.u32 %v98, 4294901760
    %1052 = vmatpush1.msra.mxu0 %v1051
    %1053 = vmatprep.subr.mxu0 0.0
    %v1054 = vand.u32 %v99, 4294901760
    %1055 = vmatpush1.msra.mxu0 %v1054
    %1056 = vmatprep.subr.mxu0 0.0
    %v1057 = vand.u32 %v100, 4294901760
    %1058 = vmatpush1.msra.mxu0 %v1057
    %1059 = vmatprep.subr.mxu0 0.0
    %v1060 = vand.u32 %v101, 4294901760
    %1061 = vmatpush1.msra.mxu0 %v1060
    %1062 = vmatprep.subr.mxu0 0.0
    %v1063 = vand.u32 %v102, 4294901760
    %1064 = vmatpush1.msra.mxu0 %v1063
    %1065 = vmatprep.subr.mxu0 0.0
    %v1066 = vand.u32 %v103, 4294901760
    %1067 = vmatpush1.msra.mxu0 %v1066
    %v1068 = vand.u32 %v107, 4294901760
    %v1069 = vsub.f32 %v107, %v1068
    %v1070 = vand.u32 %v1069, 4294901760
    %v1071 = vsub.f32 %v1069, %v1070
    %v1072 = vand.u32 %v1071, 4294901760
    %1073 = vmatprep.mubr.f32.mxu0 %v1072
    %v1074 = vand.u32 %v39, 4294901760
    %v1075 = vsub.f32 %v39, %v1074
    %v1076 = vand.u32 %v1075, 4294901760
    %v1077 = vsub.f32 %v1075, %v1076
    %v1078 = vand.u32 %v1077, 4294901760
    %1079 = vmatmul.mubr.f32.gmra.mrb[0].mxu0 %v1078
    %v1080 = vpop.f32.mrb[0].mxu0
    %v1081 = vadd.f32 %v969, %v1080
    %v1082 = vpop.f32.mrb[0].mxu0
    %1083 = vdwg.mxu0
    %1084 = vmatprep.subr.mxu0 0.0
    %v1085 = vand.u32 %v72, 4294901760
    %v1086 = vsub.f32 %v72, %v1085
    %v1087 = vand.u32 %v1086, 4294901760
    %v1088 = vsub.f32 %v1086, %v1087
    %v1089 = vand.u32 %v1088, 4294901760
    %1090 = vmatpush1.msra.mxu0 %v1089
    %1091 = vmatprep.subr.mxu0 0.0
    %v1092 = vand.u32 %v73, 4294901760
    %v1093 = vsub.f32 %v73, %v1092
    %v1094 = vand.u32 %v1093, 4294901760
    %v1095 = vsub.f32 %v1093, %v1094
    %v1096 = vand.u32 %v1095, 4294901760
    %1097 = vmatpush1.msra.mxu0 %v1096
    %1098 = vmatprep.subr.mxu0 0.0
    %v1099 = vand.u32 %v74, 4294901760
    %v1100 = vsub.f32 %v74, %v1099
    %v1101 = vand.u32 %v1100, 4294901760
    %v1102 = vsub.f32 %v1100, %v1101
    %v1103 = vand.u32 %v1102, 4294901760
    %1104 = vmatpush1.msra.mxu0 %v1103
    %1105 = vmatprep.subr.mxu0 0.0
    %v1106 = vand.u32 %v75, 4294901760
    %v1107 = vsub.f32 %v75, %v1106
    %v1108 = vand.u32 %v1107, 4294901760
    %v1109 = vsub.f32 %v1107, %v1108
    %v1110 = vand.u32 %v1109, 4294901760
    %1111 = vmatpush1.msra.mxu0 %v1110
    %1112 = vmatprep.subr.mxu0 0.0
    %v1113 = vand.u32 %v76, 4294901760
    %v1114 = vsub.f32 %v76, %v1113
    %v1115 = vand.u32 %v1114, 4294901760
    %v1116 = vsub.f32 %v1114, %v1115
    %v1117 = vand.u32 %v1116, 4294901760
    %1118 = vmatpush1.msra.mxu0 %v1117
    %1119 = vmatprep.subr.mxu0 0.0
    %v1120 = vand.u32 %v77, 4294901760
    %v1121 = vsub.f32 %v77, %v1120
    %v1122 = vand.u32 %v1121, 4294901760
    %v1123 = vsub.f32 %v1121, %v1122
    %v1124 = vand.u32 %v1123, 4294901760
    %1125 = vmatpush1.msra.mxu0 %v1124
    %1126 = vmatprep.subr.mxu0 0.0
    %v1127 = vand.u32 %v78, 4294901760
    %v1128 = vsub.f32 %v78, %v1127
    %v1129 = vand.u32 %v1128, 4294901760
    %v1130 = vsub.f32 %v1128, %v1129
    %v1131 = vand.u32 %v1130, 4294901760
    %1132 = vmatpush1.msra.mxu0 %v1131
    %1133 = vmatprep.subr.mxu0 0.0
    %v1134 = vand.u32 %v79, 4294901760
    %v1135 = vsub.f32 %v79, %v1134
    %v1136 = vand.u32 %v1135, 4294901760
    %v1137 = vsub.f32 %v1135, %v1136
    %v1138 = vand.u32 %v1137, 4294901760
    %1139 = vmatpush1.msra.mxu0 %v1138
    %1140 = vmatprep.subr.mxu0 0.0
    %v1141 = vand.u32 %v80, 4294901760
    %v1142 = vsub.f32 %v80, %v1141
    %v1143 = vand.u32 %v1142, 4294901760
    %v1144 = vsub.f32 %v1142, %v1143
    %v1145 = vand.u32 %v1144, 4294901760
    %1146 = vmatpush1.msra.mxu0 %v1145
    %1147 = vmatprep.subr.mxu0 0.0
    %v1148 = vand.u32 %v81, 4294901760
    %v1149 = vsub.f32 %v81, %v1148
    %v1150 = vand.u32 %v1149, 4294901760
    %v1151 = vsub.f32 %v1149, %v1150
    %v1152 = vand.u32 %v1151, 4294901760
    %1153 = vmatpush1.msra.mxu0 %v1152
    %1154 = vmatprep.subr.mxu0 0.0
    %v1155 = vand.u32 %v82, 4294901760
    %v1156 = vsub.f32 %v82, %v1155
    %v1157 = vand.u32 %v1156, 4294901760
    %v1158 = vsub.f32 %v1156, %v1157
    %v1159 = vand.u32 %v1158, 4294901760
    %1160 = vmatpush1.msra.mxu0 %v1159
    %1161 = vmatprep.subr.mxu0 0.0
    %v1162 = vand.u32 %v83, 4294901760
    %v1163 = vsub.f32 %v83, %v1162
    %v1164 = vand.u32 %v1163, 4294901760
    %v1165 = vsub.f32 %v1163, %v1164
    %v1166 = vand.u32 %v1165, 4294901760
    %1167 = vmatpush1.msra.mxu0 %v1166
    %1168 = vmatprep.subr.mxu0 0.0
    %v1169 = vand.u32 %v84, 4294901760
    %v1170 = vsub.f32 %v84, %v1169
    %v1171 = vand.u32 %v1170, 4294901760
    %v1172 = vsub.f32 %v1170, %v1171
    %v1173 = vand.u32 %v1172, 4294901760
    %1174 = vmatpush1.msra.mxu0 %v1173
    %1175 = vmatprep.subr.mxu0 0.0
    %v1176 = vand.u32 %v85, 4294901760
    %v1177 = vsub.f32 %v85, %v1176
    %v1178 = vand.u32 %v1177, 4294901760
    %v1179 = vsub.f32 %v1177, %v1178
    %v1180 = vand.u32 %v1179, 4294901760
    %1181 = vmatpush1.msra.mxu0 %v1180
    %1182 = vmatprep.subr.mxu0 0.0
    %v1183 = vand.u32 %v86, 4294901760
    %v1184 = vsub.f32 %v86, %v1183
    %v1185 = vand.u32 %v1184, 4294901760
    %v1186 = vsub.f32 %v1184, %v1185
    %v1187 = vand.u32 %v1186, 4294901760
    %1188 = vmatpush1.msra.mxu0 %v1187
    %1189 = vmatprep.subr.mxu0 0.0
    %v1190 = vand.u32 %v87, 4294901760
    %v1191 = vsub.f32 %v87, %v1190
    %v1192 = vand.u32 %v1191, 4294901760
    %v1193 = vsub.f32 %v1191, %v1192
    %v1194 = vand.u32 %v1193, 4294901760
    %1195 = vmatpush1.msra.mxu0 %v1194
    %1196 = vmatprep.subr.mxu0 0.0
    %v1197 = vand.u32 %v88, 4294901760
    %v1198 = vsub.f32 %v88, %v1197
    %v1199 = vand.u32 %v1198, 4294901760
    %v1200 = vsub.f32 %v1198, %v1199
    %v1201 = vand.u32 %v1200, 4294901760
    %1202 = vmatpush1.msra.mxu0 %v1201
    %1203 = vmatprep.subr.mxu0 0.0
    %v1204 = vand.u32 %v89, 4294901760
    %v1205 = vsub.f32 %v89, %v1204
    %v1206 = vand.u32 %v1205, 4294901760
    %v1207 = vsub.f32 %v1205, %v1206
    %v1208 = vand.u32 %v1207, 4294901760
    %1209 = vmatpush1.msra.mxu0 %v1208
    %1210 = vmatprep.subr.mxu0 0.0
    %v1211 = vand.u32 %v90, 4294901760
    %v1212 = vsub.f32 %v90, %v1211
    %v1213 = vand.u32 %v1212, 4294901760
    %v1214 = vsub.f32 %v1212, %v1213
    %v1215 = vand.u32 %v1214, 4294901760
    %1216 = vmatpush1.msra.mxu0 %v1215
    %1217 = vmatprep.subr.mxu0 0.0
    %v1218 = vand.u32 %v91, 4294901760
    %v1219 = vsub.f32 %v91, %v1218
    %v1220 = vand.u32 %v1219, 4294901760
    %v1221 = vsub.f32 %v1219, %v1220
    %v1222 = vand.u32 %v1221, 4294901760
    %1223 = vmatpush1.msra.mxu0 %v1222
    %1224 = vmatprep.subr.mxu0 0.0
    %v1225 = vand.u32 %v92, 4294901760
    %v1226 = vsub.f32 %v92, %v1225
    %v1227 = vand.u32 %v1226, 4294901760
    %v1228 = vsub.f32 %v1226, %v1227
    %v1229 = vand.u32 %v1228, 4294901760
    %1230 = vmatpush1.msra.mxu0 %v1229
    %1231 = vmatprep.subr.mxu0 0.0
    %v1232 = vand.u32 %v93, 4294901760
    %v1233 = vsub.f32 %v93, %v1232
    %v1234 = vand.u32 %v1233, 4294901760
    %v1235 = vsub.f32 %v1233, %v1234
    %v1236 = vand.u32 %v1235, 4294901760
    %1237 = vmatpush1.msra.mxu0 %v1236
    %1238 = vmatprep.subr.mxu0 0.0
    %v1239 = vand.u32 %v94, 4294901760
    %v1240 = vsub.f32 %v94, %v1239
    %v1241 = vand.u32 %v1240, 4294901760
    %v1242 = vsub.f32 %v1240, %v1241
    %v1243 = vand.u32 %v1242, 4294901760
    %1244 = vmatpush1.msra.mxu0 %v1243
    %1245 = vmatprep.subr.mxu0 0.0
    %v1246 = vand.u32 %v95, 4294901760
    %v1247 = vsub.f32 %v95, %v1246
    %v1248 = vand.u32 %v1247, 4294901760
    %v1249 = vsub.f32 %v1247, %v1248
    %v1250 = vand.u32 %v1249, 4294901760
    %1251 = vmatpush1.msra.mxu0 %v1250
    %1252 = vmatprep.subr.mxu0 0.0
    %v1253 = vand.u32 %v96, 4294901760
    %v1254 = vsub.f32 %v96, %v1253
    %v1255 = vand.u32 %v1254, 4294901760
    %v1256 = vsub.f32 %v1254, %v1255
    %v1257 = vand.u32 %v1256, 4294901760
    %1258 = vmatpush1.msra.mxu0 %v1257
    %1259 = vmatprep.subr.mxu0 0.0
    %v1260 = vand.u32 %v97, 4294901760
    %v1261 = vsub.f32 %v97, %v1260
    %v1262 = vand.u32 %v1261, 4294901760
    %v1263 = vsub.f32 %v1261, %v1262
    %v1264 = vand.u32 %v1263, 4294901760
    %1265 = vmatpush1.msra.mxu0 %v1264
    %1266 = vmatprep.subr.mxu0 0.0
    %v1267 = vand.u32 %v98, 4294901760
    %v1268 = vsub.f32 %v98, %v1267
    %v1269 = vand.u32 %v1268, 4294901760
    %v1270 = vsub.f32 %v1268, %v1269
    %v1271 = vand.u32 %v1270, 4294901760
    %1272 = vmatpush1.msra.mxu0 %v1271
    %1273 = vmatprep.subr.mxu0 0.0
    %v1274 = vand.u32 %v99, 4294901760
    %v1275 = vsub.f32 %v99, %v1274
    %v1276 = vand.u32 %v1275, 4294901760
    %v1277 = vsub.f32 %v1275, %v1276
    %v1278 = vand.u32 %v1277, 4294901760
    %1279 = vmatpush1.msra.mxu0 %v1278
    %1280 = vmatprep.subr.mxu0 0.0
    %v1281 = vand.u32 %v100, 4294901760
    %v1282 = vsub.f32 %v100, %v1281
    %v1283 = vand.u32 %v1282, 4294901760
    %v1284 = vsub.f32 %v1282, %v1283
    %v1285 = vand.u32 %v1284, 4294901760
    %1286 = vmatpush1.msra.mxu0 %v1285
    %1287 = vmatprep.subr.mxu0 0.0
    %v1288 = vand.u32 %v101, 4294901760
    %v1289 = vsub.f32 %v101, %v1288
    %v1290 = vand.u32 %v1289, 4294901760
    %v1291 = vsub.f32 %v1289, %v1290
    %v1292 = vand.u32 %v1291, 4294901760
    %1293 = vmatpush1.msra.mxu0 %v1292
    %1294 = vmatprep.subr.mxu0 0.0
    %v1295 = vand.u32 %v102, 4294901760
    %v1296 = vsub.f32 %v102, %v1295
    %v1297 = vand.u32 %v1296, 4294901760
    %v1298 = vsub.f32 %v1296, %v1297
    %v1299 = vand.u32 %v1298, 4294901760
    %1300 = vmatpush1.msra.mxu0 %v1299
    %1301 = vmatprep.subr.mxu0 0.0
    %v1302 = vand.u32 %v103, 4294901760
    %v1303 = vsub.f32 %v103, %v1302
    %v1304 = vand.u32 %v1303, 4294901760
    %v1305 = vsub.f32 %v1303, %v1304
    %v1306 = vand.u32 %v1305, 4294901760
    %1307 = vmatpush1.msra.mxu0 %v1306
    %v1308 = vand.u32 %v107, 4294901760
    %1309 = vmatprep.mubr.f32.mxu0 %v1308
    %v1310 = vand.u32 %v39, 4294901760
    %1311 = vmatmul.mubr.f32.gmra.mrb[0].mxu0 %v1310
    %v1312 = vpop.f32.mrb[0].mxu0
    %v1313 = vadd.f32 %v1081, %v1312
    %v1314 = vpop.f32.mrb[0].mxu0
    %1315 = vdwg.mxu0
    %1316 = vmatprep.subr.mxu0 0.0
    %v1317 = vand.u32 %v72, 4294901760
    %v1318 = vsub.f32 %v72, %v1317
    %1319 = vmatpush1.msra.mxu0 %v1318
    %1320 = vmatprep.subr.mxu0 0.0
    %v1321 = vand.u32 %v73, 4294901760
    %v1322 = vsub.f32 %v73, %v1321
    %1323 = vmatpush1.msra.mxu0 %v1322
    %1324 = vmatprep.subr.mxu0 0.0
    %v1325 = vand.u32 %v74, 4294901760
    %v1326 = vsub.f32 %v74, %v1325
    %1327 = vmatpush1.msra.mxu0 %v1326
    %1328 = vmatprep.subr.mxu0 0.0
    %v1329 = vand.u32 %v75, 4294901760
    %v1330 = vsub.f32 %v75, %v1329
    %1331 = vmatpush1.msra.mxu0 %v1330
    %1332 = vmatprep.subr.mxu0 0.0
    %v1333 = vand.u32 %v76, 4294901760
    %v1334 = vsub.f32 %v76, %v1333
    %1335 = vmatpush1.msra.mxu0 %v1334
    %1336 = vmatprep.subr.mxu0 0.0
    %v1337 = vand.u32 %v77, 4294901760
    %v1338 = vsub.f32 %v77, %v1337
    %1339 = vmatpush1.msra.mxu0 %v1338
    %1340 = vmatprep.subr.mxu0 0.0
    %v1341 = vand.u32 %v78, 4294901760
    %v1342 = vsub.f32 %v78, %v1341
    %1343 = vmatpush1.msra.mxu0 %v1342
    %1344 = vmatprep.subr.mxu0 0.0
    %v1345 = vand.u32 %v79, 4294901760
    %v1346 = vsub.f32 %v79, %v1345
    %1347 = vmatpush1.msra.mxu0 %v1346
    %1348 = vmatprep.subr.mxu0 0.0
    %v1349 = vand.u32 %v80, 4294901760
    %v1350 = vsub.f32 %v80, %v1349
    %1351 = vmatpush1.msra.mxu0 %v1350
    %1352 = vmatprep.subr.mxu0 0.0
    %v1353 = vand.u32 %v81, 4294901760
    %v1354 = vsub.f32 %v81, %v1353
    %1355 = vmatpush1.msra.mxu0 %v1354
    %1356 = vmatprep.subr.mxu0 0.0
    %v1357 = vand.u32 %v82, 4294901760
    %v1358 = vsub.f32 %v82, %v1357
    %1359 = vmatpush1.msra.mxu0 %v1358
    %1360 = vmatprep.subr.mxu0 0.0
    %v1361 = vand.u32 %v83, 4294901760
    %v1362 = vsub.f32 %v83, %v1361
    %1363 = vmatpush1.msra.mxu0 %v1362
    %1364 = vmatprep.subr.mxu0 0.0
    %v1365 = vand.u32 %v84, 4294901760
    %v1366 = vsub.f32 %v84, %v1365
    %1367 = vmatpush1.msra.mxu0 %v1366
    %1368 = vmatprep.subr.mxu0 0.0
    %v1369 = vand.u32 %v85, 4294901760
    %v1370 = vsub.f32 %v85, %v1369
    %1371 = vmatpush1.msra.mxu0 %v1370
    %1372 = vmatprep.subr.mxu0 0.0
    %v1373 = vand.u32 %v86, 4294901760
    %v1374 = vsub.f32 %v86, %v1373
    %1375 = vmatpush1.msra.mxu0 %v1374
    %1376 = vmatprep.subr.mxu0 0.0
    %v1377 = vand.u32 %v87, 4294901760
    %v1378 = vsub.f32 %v87, %v1377
    %1379 = vmatpush1.msra.mxu0 %v1378
    %1380 = vmatprep.subr.mxu0 0.0
    %v1381 = vand.u32 %v88, 4294901760
    %v1382 = vsub.f32 %v88, %v1381
    %1383 = vmatpush1.msra.mxu0 %v1382
    %1384 = vmatprep.subr.mxu0 0.0
    %v1385 = vand.u32 %v89, 4294901760
    %v1386 = vsub.f32 %v89, %v1385
    %1387 = vmatpush1.msra.mxu0 %v1386
    %1388 = vmatprep.subr.mxu0 0.0
    %v1389 = vand.u32 %v90, 4294901760
    %v1390 = vsub.f32 %v90, %v1389
    %1391 = vmatpush1.msra.mxu0 %v1390
    %1392 = vmatprep.subr.mxu0 0.0
    %v1393 = vand.u32 %v91, 4294901760
    %v1394 = vsub.f32 %v91, %v1393
    %1395 = vmatpush1.msra.mxu0 %v1394
    %1396 = vmatprep.subr.mxu0 0.0
    %v1397 = vand.u32 %v92, 4294901760
    %v1398 = vsub.f32 %v92, %v1397
    %1399 = vmatpush1.msra.mxu0 %v1398
    %1400 = vmatprep.subr.mxu0 0.0
    %v1401 = vand.u32 %v93, 4294901760
    %v1402 = vsub.f32 %v93, %v1401
    %1403 = vmatpush1.msra.mxu0 %v1402
    %1404 = vmatprep.subr.mxu0 0.0
    %v1405 = vand.u32 %v94, 4294901760
    %v1406 = vsub.f32 %v94, %v1405
    %1407 = vmatpush1.msra.mxu0 %v1406
    %1408 = vmatprep.subr.mxu0 0.0
    %v1409 = vand.u32 %v95, 4294901760
    %v1410 = vsub.f32 %v95, %v1409
    %1411 = vmatpush1.msra.mxu0 %v1410
    %1412 = vmatprep.subr.mxu0 0.0
    %v1413 = vand.u32 %v96, 4294901760
    %v1414 = vsub.f32 %v96, %v1413
    %1415 = vmatpush1.msra.mxu0 %v1414
    %1416 = vmatprep.subr.mxu0 0.0
    %v1417 = vand.u32 %v97, 4294901760
    %v1418 = vsub.f32 %v97, %v1417
    %1419 = vmatpush1.msra.mxu0 %v1418
    %1420 = vmatprep.subr.mxu0 0.0
    %v1421 = vand.u32 %v98, 4294901760
    %v1422 = vsub.f32 %v98, %v1421
    %1423 = vmatpush1.msra.mxu0 %v1422
    %1424 = vmatprep.subr.mxu0 0.0
    %v1425 = vand.u32 %v99, 4294901760
    %v1426 = vsub.f32 %v99, %v1425
    %1427 = vmatpush1.msra.mxu0 %v1426
    %1428 = vmatprep.subr.mxu0 0.0
    %v1429 = vand.u32 %v100, 4294901760
    %v1430 = vsub.f32 %v100, %v1429
    %1431 = vmatpush1.msra.mxu0 %v1430
    %1432 = vmatprep.subr.mxu0 0.0
    %v1433 = vand.u32 %v101, 4294901760
    %v1434 = vsub.f32 %v101, %v1433
    %1435 = vmatpush1.msra.mxu0 %v1434
    %1436 = vmatprep.subr.mxu0 0.0
    %v1437 = vand.u32 %v102, 4294901760
    %v1438 = vsub.f32 %v102, %v1437
    %1439 = vmatpush1.msra.mxu0 %v1438
    %1440 = vmatprep.subr.mxu0 0.0
    %v1441 = vand.u32 %v103, 4294901760
    %v1442 = vsub.f32 %v103, %v1441
    %1443 = vmatpush1.msra.mxu0 %v1442
    %v1444 = vand.u32 %v107, 4294901760
    %v1445 = vsub.f32 %v107, %v1444
    %1446 = vmatprep.mubr.f32.mxu0 %v1445
    %v1447 = vand.u32 %v39, 4294901760
    %v1448 = vsub.f32 %v39, %v1447
    %1449 = vmatmul.mubr.f32.gmra.mrb[0].mxu0 %v1448
    %v1450 = vpop.f32.mrb[0].mxu0
    %v1451 = vadd.f32 %v1313, %v1450
    %v1452 = vpop.f32.mrb[0].mxu0
    %1453 = vdwg.mxu0
    %1454 = vmatprep.subr.mxu0 0.0
    %v1455 = vand.u32 %v72, 4294901760
    %1456 = vmatpush1.msra.mxu0 %v1455
    %1457 = vmatprep.subr.mxu0 0.0
    %v1458 = vand.u32 %v73, 4294901760
    %1459 = vmatpush1.msra.mxu0 %v1458
    %1460 = vmatprep.subr.mxu0 0.0
    %v1461 = vand.u32 %v74, 4294901760
    %1462 = vmatpush1.msra.mxu0 %v1461
    %1463 = vmatprep.subr.mxu0 0.0
    %v1464 = vand.u32 %v75, 4294901760
    %1465 = vmatpush1.msra.mxu0 %v1464
    %1466 = vmatprep.subr.mxu0 0.0
    %v1467 = vand.u32 %v76, 4294901760
    %1468 = vmatpush1.msra.mxu0 %v1467
    %1469 = vmatprep.subr.mxu0 0.0
    %v1470 = vand.u32 %v77, 4294901760
    %1471 = vmatpush1.msra.mxu0 %v1470
    %1472 = vmatprep.subr.mxu0 0.0
    %v1473 = vand.u32 %v78, 4294901760
    %1474 = vmatpush1.msra.mxu0 %v1473
    %1475 = vmatprep.subr.mxu0 0.0
    %v1476 = vand.u32 %v79, 4294901760
    %1477 = vmatpush1.msra.mxu0 %v1476
    %1478 = vmatprep.subr.mxu0 0.0
    %v1479 = vand.u32 %v80, 4294901760
    %1480 = vmatpush1.msra.mxu0 %v1479
    %1481 = vmatprep.subr.mxu0 0.0
    %v1482 = vand.u32 %v81, 4294901760
    %1483 = vmatpush1.msra.mxu0 %v1482
    %1484 = vmatprep.subr.mxu0 0.0
    %v1485 = vand.u32 %v82, 4294901760
    %1486 = vmatpush1.msra.mxu0 %v1485
    %1487 = vmatprep.subr.mxu0 0.0
    %v1488 = vand.u32 %v83, 4294901760
    %1489 = vmatpush1.msra.mxu0 %v1488
    %1490 = vmatprep.subr.mxu0 0.0
    %v1491 = vand.u32 %v84, 4294901760
    %1492 = vmatpush1.msra.mxu0 %v1491
    %1493 = vmatprep.subr.mxu0 0.0
    %v1494 = vand.u32 %v85, 4294901760
    %1495 = vmatpush1.msra.mxu0 %v1494
    %1496 = vmatprep.subr.mxu0 0.0
    %v1497 = vand.u32 %v86, 4294901760
    %1498 = vmatpush1.msra.mxu0 %v1497
    %1499 = vmatprep.subr.mxu0 0.0
    %v1500 = vand.u32 %v87, 4294901760
    %1501 = vmatpush1.msra.mxu0 %v1500
    %1502 = vmatprep.subr.mxu0 0.0
    %v1503 = vand.u32 %v88, 4294901760
    %1504 = vmatpush1.msra.mxu0 %v1503
    %1505 = vmatprep.subr.mxu0 0.0
    %v1506 = vand.u32 %v89, 4294901760
    %1507 = vmatpush1.msra.mxu0 %v1506
    %1508 = vmatprep.subr.mxu0 0.0
    %v1509 = vand.u32 %v90, 4294901760
    %1510 = vmatpush1.msra.mxu0 %v1509
    %1511 = vmatprep.subr.mxu0 0.0
    %v1512 = vand.u32 %v91, 4294901760
    %1513 = vmatpush1.msra.mxu0 %v1512
    %1514 = vmatprep.subr.mxu0 0.0
    %v1515 = vand.u32 %v92, 4294901760
    %1516 = vmatpush1.msra.mxu0 %v1515
    %1517 = vmatprep.subr.mxu0 0.0
    %v1518 = vand.u32 %v93, 4294901760
    %1519 = vmatpush1.msra.mxu0 %v1518
    %1520 = vmatprep.subr.mxu0 0.0
    %v1521 = vand.u32 %v94, 4294901760
    %1522 = vmatpush1.msra.mxu0 %v1521
    %1523 = vmatprep.subr.mxu0 0.0
    %v1524 = vand.u32 %v95, 4294901760
    %1525 = vmatpush1.msra.mxu0 %v1524
    %1526 = vmatprep.subr.mxu0 0.0
    %v1527 = vand.u32 %v96, 4294901760
    %1528 = vmatpush1.msra.mxu0 %v1527
    %1529 = vmatprep.subr.mxu0 0.0
    %v1530 = vand.u32 %v97, 4294901760
    %1531 = vmatpush1.msra.mxu0 %v1530
    %1532 = vmatprep.subr.mxu0 0.0
    %v1533 = vand.u32 %v98, 4294901760
    %1534 = vmatpush1.msra.mxu0 %v1533
    %1535 = vmatprep.subr.mxu0 0.0
    %v1536 = vand.u32 %v99, 4294901760
    %1537 = vmatpush1.msra.mxu0 %v1536
    %1538 = vmatprep.subr.mxu0 0.0
    %v1539 = vand.u32 %v100, 4294901760
    %1540 = vmatpush1.msra.mxu0 %v1539
    %1541 = vmatprep.subr.mxu0 0.0
    %v1542 = vand.u32 %v101, 4294901760
    %1543 = vmatpush1.msra.mxu0 %v1542
    %1544 = vmatprep.subr.mxu0 0.0
    %v1545 = vand.u32 %v102, 4294901760
    %1546 = vmatpush1.msra.mxu0 %v1545
    %1547 = vmatprep.subr.mxu0 0.0
    %v1548 = vand.u32 %v103, 4294901760
    %1549 = vmatpush1.msra.mxu0 %v1548
    %v1550 = vand.u32 %v107, 4294901760
    %v1551 = vsub.f32 %v107, %v1550
    %v1552 = vand.u32 %v1551, 4294901760
    %1553 = vmatprep.mubr.f32.mxu0 %v1552
    %v1554 = vand.u32 %v39, 4294901760
    %v1555 = vsub.f32 %v39, %v1554
    %v1556 = vand.u32 %v1555, 4294901760
    %1557 = vmatmul.mubr.f32.gmra.mrb[0].mxu0 %v1556
    %v1558 = vpop.f32.mrb[0].mxu0
    %v1559 = vadd.f32 %v1451, %v1558
    %v1560 = vpop.f32.mrb[0].mxu0
    %1561 = vdwg.mxu0
    %1562 = vmatprep.subr.mxu0 0.0
    %v1563 = vand.u32 %v72, 4294901760
    %v1564 = vsub.f32 %v72, %v1563
    %v1565 = vand.u32 %v1564, 4294901760
    %1566 = vmatpush1.msra.mxu0 %v1565
    %1567 = vmatprep.subr.mxu0 0.0
    %v1568 = vand.u32 %v73, 4294901760
    %v1569 = vsub.f32 %v73, %v1568
    %v1570 = vand.u32 %v1569, 4294901760
    %1571 = vmatpush1.msra.mxu0 %v1570
    %1572 = vmatprep.subr.mxu0 0.0
    %v1573 = vand.u32 %v74, 4294901760
    %v1574 = vsub.f32 %v74, %v1573
    %v1575 = vand.u32 %v1574, 4294901760
    %1576 = vmatpush1.msra.mxu0 %v1575
    %1577 = vmatprep.subr.mxu0 0.0
    %v1578 = vand.u32 %v75, 4294901760
    %v1579 = vsub.f32 %v75, %v1578
    %v1580 = vand.u32 %v1579, 4294901760
    %1581 = vmatpush1.msra.mxu0 %v1580
    %1582 = vmatprep.subr.mxu0 0.0
    %v1583 = vand.u32 %v76, 4294901760
    %v1584 = vsub.f32 %v76, %v1583
    %v1585 = vand.u32 %v1584, 4294901760
    %1586 = vmatpush1.msra.mxu0 %v1585
    %1587 = vmatprep.subr.mxu0 0.0
    %v1588 = vand.u32 %v77, 4294901760
    %v1589 = vsub.f32 %v77, %v1588
    %v1590 = vand.u32 %v1589, 4294901760
    %1591 = vmatpush1.msra.mxu0 %v1590
    %1592 = vmatprep.subr.mxu0 0.0
    %v1593 = vand.u32 %v78, 4294901760
    %v1594 = vsub.f32 %v78, %v1593
    %v1595 = vand.u32 %v1594, 4294901760
    %1596 = vmatpush1.msra.mxu0 %v1595
    %1597 = vmatprep.subr.mxu0 0.0
    %v1598 = vand.u32 %v79, 4294901760
    %v1599 = vsub.f32 %v79, %v1598
    %v1600 = vand.u32 %v1599, 4294901760
    %1601 = vmatpush1.msra.mxu0 %v1600
    %1602 = vmatprep.subr.mxu0 0.0
    %v1603 = vand.u32 %v80, 4294901760
    %v1604 = vsub.f32 %v80, %v1603
    %v1605 = vand.u32 %v1604, 4294901760
    %1606 = vmatpush1.msra.mxu0 %v1605
    %1607 = vmatprep.subr.mxu0 0.0
    %v1608 = vand.u32 %v81, 4294901760
    %v1609 = vsub.f32 %v81, %v1608
    %v1610 = vand.u32 %v1609, 4294901760
    %1611 = vmatpush1.msra.mxu0 %v1610
    %1612 = vmatprep.subr.mxu0 0.0
    %v1613 = vand.u32 %v82, 4294901760
    %v1614 = vsub.f32 %v82, %v1613
    %v1615 = vand.u32 %v1614, 4294901760
    %1616 = vmatpush1.msra.mxu0 %v1615
    %1617 = vmatprep.subr.mxu0 0.0
    %v1618 = vand.u32 %v83, 4294901760
    %v1619 = vsub.f32 %v83, %v1618
    %v1620 = vand.u32 %v1619, 4294901760
    %1621 = vmatpush1.msra.mxu0 %v1620
    %1622 = vmatprep.subr.mxu0 0.0
    %v1623 = vand.u32 %v84, 4294901760
    %v1624 = vsub.f32 %v84, %v1623
    %v1625 = vand.u32 %v1624, 4294901760
    %1626 = vmatpush1.msra.mxu0 %v1625
    %1627 = vmatprep.subr.mxu0 0.0
    %v1628 = vand.u32 %v85, 4294901760
    %v1629 = vsub.f32 %v85, %v1628
    %v1630 = vand.u32 %v1629, 4294901760
    %1631 = vmatpush1.msra.mxu0 %v1630
    %1632 = vmatprep.subr.mxu0 0.0
    %v1633 = vand.u32 %v86, 4294901760
    %v1634 = vsub.f32 %v86, %v1633
    %v1635 = vand.u32 %v1634, 4294901760
    %1636 = vmatpush1.msra.mxu0 %v1635
    %1637 = vmatprep.subr.mxu0 0.0
    %v1638 = vand.u32 %v87, 4294901760
    %v1639 = vsub.f32 %v87, %v1638
    %v1640 = vand.u32 %v1639, 4294901760
    %1641 = vmatpush1.msra.mxu0 %v1640
    %1642 = vmatprep.subr.mxu0 0.0
    %v1643 = vand.u32 %v88, 4294901760
    %v1644 = vsub.f32 %v88, %v1643
    %v1645 = vand.u32 %v1644, 4294901760
    %1646 = vmatpush1.msra.mxu0 %v1645
    %1647 = vmatprep.subr.mxu0 0.0
    %v1648 = vand.u32 %v89, 4294901760
    %v1649 = vsub.f32 %v89, %v1648
    %v1650 = vand.u32 %v1649, 4294901760
    %1651 = vmatpush1.msra.mxu0 %v1650
    %1652 = vmatprep.subr.mxu0 0.0
    %v1653 = vand.u32 %v90, 4294901760
    %v1654 = vsub.f32 %v90, %v1653
    %v1655 = vand.u32 %v1654, 4294901760
    %1656 = vmatpush1.msra.mxu0 %v1655
    %1657 = vmatprep.subr.mxu0 0.0
    %v1658 = vand.u32 %v91, 4294901760
    %v1659 = vsub.f32 %v91, %v1658
    %v1660 = vand.u32 %v1659, 4294901760
    %1661 = vmatpush1.msra.mxu0 %v1660
    %1662 = vmatprep.subr.mxu0 0.0
    %v1663 = vand.u32 %v92, 4294901760
    %v1664 = vsub.f32 %v92, %v1663
    %v1665 = vand.u32 %v1664, 4294901760
    %1666 = vmatpush1.msra.mxu0 %v1665
    %1667 = vmatprep.subr.mxu0 0.0
    %v1668 = vand.u32 %v93, 4294901760
    %v1669 = vsub.f32 %v93, %v1668
    %v1670 = vand.u32 %v1669, 4294901760
    %1671 = vmatpush1.msra.mxu0 %v1670
    %1672 = vmatprep.subr.mxu0 0.0
    %v1673 = vand.u32 %v94, 4294901760
    %v1674 = vsub.f32 %v94, %v1673
    %v1675 = vand.u32 %v1674, 4294901760
    %1676 = vmatpush1.msra.mxu0 %v1675
    %1677 = vmatprep.subr.mxu0 0.0
    %v1678 = vand.u32 %v95, 4294901760
    %v1679 = vsub.f32 %v95, %v1678
    %v1680 = vand.u32 %v1679, 4294901760
    %1681 = vmatpush1.msra.mxu0 %v1680
    %1682 = vmatprep.subr.mxu0 0.0
    %v1683 = vand.u32 %v96, 4294901760
    %v1684 = vsub.f32 %v96, %v1683
    %v1685 = vand.u32 %v1684, 4294901760
    %1686 = vmatpush1.msra.mxu0 %v1685
    %1687 = vmatprep.subr.mxu0 0.0
    %v1688 = vand.u32 %v97, 4294901760
    %v1689 = vsub.f32 %v97, %v1688
    %v1690 = vand.u32 %v1689, 4294901760
    %1691 = vmatpush1.msra.mxu0 %v1690
    %1692 = vmatprep.subr.mxu0 0.0
    %v1693 = vand.u32 %v98, 4294901760
    %v1694 = vsub.f32 %v98, %v1693
    %v1695 = vand.u32 %v1694, 4294901760
    %1696 = vmatpush1.msra.mxu0 %v1695
    %1697 = vmatprep.subr.mxu0 0.0
    %v1698 = vand.u32 %v99, 4294901760
    %v1699 = vsub.f32 %v99, %v1698
    %v1700 = vand.u32 %v1699, 4294901760
    %1701 = vmatpush1.msra.mxu0 %v1700
    %1702 = vmatprep.subr.mxu0 0.0
    %v1703 = vand.u32 %v100, 4294901760
    %v1704 = vsub.f32 %v100, %v1703
    %v1705 = vand.u32 %v1704, 4294901760
    %1706 = vmatpush1.msra.mxu0 %v1705
    %1707 = vmatprep.subr.mxu0 0.0
    %v1708 = vand.u32 %v101, 4294901760
    %v1709 = vsub.f32 %v101, %v1708
    %v1710 = vand.u32 %v1709, 4294901760
    %1711 = vmatpush1.msra.mxu0 %v1710
    %1712 = vmatprep.subr.mxu0 0.0
    %v1713 = vand.u32 %v102, 4294901760
    %v1714 = vsub.f32 %v102, %v1713
    %v1715 = vand.u32 %v1714, 4294901760
    %1716 = vmatpush1.msra.mxu0 %v1715
    %1717 = vmatprep.subr.mxu0 0.0
    %v1718 = vand.u32 %v103, 4294901760
    %v1719 = vsub.f32 %v103, %v1718
    %v1720 = vand.u32 %v1719, 4294901760
    %1721 = vmatpush1.msra.mxu0 %v1720
    %v1722 = vand.u32 %v107, 4294901760
    %1723 = vmatprep.mubr.f32.mxu0 %v1722
    %v1724 = vand.u32 %v39, 4294901760
    %1725 = vmatmul.mubr.f32.gmra.mrb[0].mxu0 %v1724
    %v1726 = vpop.f32.mrb[0].mxu0
    %v1727 = vadd.f32 %v1559, %v1726
    %v1728 = vpop.f32.mrb[0].mxu0
    %1729 = vdwg.mxu0
    %1730 = vmatprep.subr.mxu0 0.0
    %v1731 = vand.u32 %v72, 4294901760
    %1732 = vmatpush1.msra.mxu0 %v1731
    %1733 = vmatprep.subr.mxu0 0.0
    %v1734 = vand.u32 %v73, 4294901760
    %1735 = vmatpush1.msra.mxu0 %v1734
    %1736 = vmatprep.subr.mxu0 0.0
    %v1737 = vand.u32 %v74, 4294901760
    %1738 = vmatpush1.msra.mxu0 %v1737
    %1739 = vmatprep.subr.mxu0 0.0
    %v1740 = vand.u32 %v75, 4294901760
    %1741 = vmatpush1.msra.mxu0 %v1740
    %1742 = vmatprep.subr.mxu0 0.0
    %v1743 = vand.u32 %v76, 4294901760
    %1744 = vmatpush1.msra.mxu0 %v1743
    %1745 = vmatprep.subr.mxu0 0.0
    %v1746 = vand.u32 %v77, 4294901760
    %1747 = vmatpush1.msra.mxu0 %v1746
    %1748 = vmatprep.subr.mxu0 0.0
    %v1749 = vand.u32 %v78, 4294901760
    %1750 = vmatpush1.msra.mxu0 %v1749
    %1751 = vmatprep.subr.mxu0 0.0
    %v1752 = vand.u32 %v79, 4294901760
    %1753 = vmatpush1.msra.mxu0 %v1752
    %1754 = vmatprep.subr.mxu0 0.0
    %v1755 = vand.u32 %v80, 4294901760
    %1756 = vmatpush1.msra.mxu0 %v1755
    %1757 = vmatprep.subr.mxu0 0.0
    %v1758 = vand.u32 %v81, 4294901760
    %1759 = vmatpush1.msra.mxu0 %v1758
    %1760 = vmatprep.subr.mxu0 0.0
    %v1761 = vand.u32 %v82, 4294901760
    %1762 = vmatpush1.msra.mxu0 %v1761
    %1763 = vmatprep.subr.mxu0 0.0
    %v1764 = vand.u32 %v83, 4294901760
    %1765 = vmatpush1.msra.mxu0 %v1764
    %1766 = vmatprep.subr.mxu0 0.0
    %v1767 = vand.u32 %v84, 4294901760
    %1768 = vmatpush1.msra.mxu0 %v1767
    %1769 = vmatprep.subr.mxu0 0.0
    %v1770 = vand.u32 %v85, 4294901760
    %1771 = vmatpush1.msra.mxu0 %v1770
    %1772 = vmatprep.subr.mxu0 0.0
    %v1773 = vand.u32 %v86, 4294901760
    %1774 = vmatpush1.msra.mxu0 %v1773
    %1775 = vmatprep.subr.mxu0 0.0
    %v1776 = vand.u32 %v87, 4294901760
    %1777 = vmatpush1.msra.mxu0 %v1776
    %1778 = vmatprep.subr.mxu0 0.0
    %v1779 = vand.u32 %v88, 4294901760
    %1780 = vmatpush1.msra.mxu0 %v1779
    %1781 = vmatprep.subr.mxu0 0.0
    %v1782 = vand.u32 %v89, 4294901760
    %1783 = vmatpush1.msra.mxu0 %v1782
    %1784 = vmatprep.subr.mxu0 0.0
    %v1785 = vand.u32 %v90, 4294901760
    %1786 = vmatpush1.msra.mxu0 %v1785
    %1787 = vmatprep.subr.mxu0 0.0
    %v1788 = vand.u32 %v91, 4294901760
    %1789 = vmatpush1.msra.mxu0 %v1788
    %1790 = vmatprep.subr.mxu0 0.0
    %v1791 = vand.u32 %v92, 4294901760
    %1792 = vmatpush1.msra.mxu0 %v1791
    %1793 = vmatprep.subr.mxu0 0.0
    %v1794 = vand.u32 %v93, 4294901760
    %1795 = vmatpush1.msra.mxu0 %v1794
    %1796 = vmatprep.subr.mxu0 0.0
    %v1797 = vand.u32 %v94, 4294901760
    %1798 = vmatpush1.msra.mxu0 %v1797
    %1799 = vmatprep.subr.mxu0 0.0
    %v1800 = vand.u32 %v95, 4294901760
    %1801 = vmatpush1.msra.mxu0 %v1800
    %1802 = vmatprep.subr.mxu0 0.0
    %v1803 = vand.u32 %v96, 4294901760
    %1804 = vmatpush1.msra.mxu0 %v1803
    %1805 = vmatprep.subr.mxu0 0.0
    %v1806 = vand.u32 %v97, 4294901760
    %1807 = vmatpush1.msra.mxu0 %v1806
    %1808 = vmatprep.subr.mxu0 0.0
    %v1809 = vand.u32 %v98, 4294901760
    %1810 = vmatpush1.msra.mxu0 %v1809
    %1811 = vmatprep.subr.mxu0 0.0
    %v1812 = vand.u32 %v99, 4294901760
    %1813 = vmatpush1.msra.mxu0 %v1812
    %1814 = vmatprep.subr.mxu0 0.0
    %v1815 = vand.u32 %v100, 4294901760
    %1816 = vmatpush1.msra.mxu0 %v1815
    %1817 = vmatprep.subr.mxu0 0.0
    %v1818 = vand.u32 %v101, 4294901760
    %1819 = vmatpush1.msra.mxu0 %v1818
    %1820 = vmatprep.subr.mxu0 0.0
    %v1821 = vand.u32 %v102, 4294901760
    %1822 = vmatpush1.msra.mxu0 %v1821
    %1823 = vmatprep.subr.mxu0 0.0
    %v1824 = vand.u32 %v103, 4294901760
    %1825 = vmatpush1.msra.mxu0 %v1824
    %v1826 = vand.u32 %v107, 4294901760
    %1827 = vmatprep.mubr.f32.mxu0 %v1826
    %v1828 = vand.u32 %v39, 4294901760
    %1829 = vmatmul.mubr.f32.gmra.mrb[0].mxu0 %v1828
    %v1830 = vpop.f32.mrb[0].mxu0
    %v1831 = vadd.f32 %v1727, %v1830
    %v1832 = vpop.f32.mrb[0].mxu0
    %1833 = vdwg.mxu0
    %1834 = vst [vmem:[#allocation7] sm:$0xf] %v1831
    // Predicated region
    $region18: #{tpu_custom_call.1} parent=1 // pred_check
      _
    $region19: #{tpu_custom_call.1} parent=1 // pred_check_branch
      %1836 = sbr.rel (0) target = $region21
    $region20: #{tpu_custom_call.1} parent=1 // pred_region
      %s1838 = ssub.s32 64, 64
      %1839 = vsyncadd [#allocation4], %s1838
      %s1841 = sshll.u32 [#allocation7], 4
      %s1842 = int_to_ptr.vmem [resolvable:$true] %s1841
      %1844 = dma.vmem_to_hbm [thread:$0]  %s1842, 64, %s2, [#allocation4]
    $region21: #{tpu_custom_call.1} parent=1 // pred_fallthru
      _
    // Predicated region
    $region22: #{tpu_custom_call.1} parent=1 // pred_check
      _
    $region23: #{tpu_custom_call.1} parent=1 // pred_check_branch
      %1846 = sbr.rel (0) target = $region25
    $region24: #{tpu_custom_call.1} parent=1 // pred_region
      %1847 = dma.done [#allocation4], 64
    $region25: #{tpu_custom_call.1} parent=1 // pred_fallthru
      _
    %1848 = vsyncpa [#allocation3], 1
    %1849 = vsyncpa [#allocation6], 1
    %1850 = vsyncpa [#allocation4], 1

</llo_original>
